<compile_context>
chip_gen: v7x
topology: tpu7x:2x2x1
jax: 0.10.0
libtpu: 0.0.40
codegen_flags: <defaults>
</compile_context>

<pallas_src>
from functools import partial

import numpy as np
import jax
import jax.numpy as jnp
from jax.experimental import pallas as pl
from jax.experimental.pallas import tpu as pltpu


# -----------------------------------------------------------------------------
# Kernel 1: per-(sample, H-tile) activations + masked reductions
# -----------------------------------------------------------------------------
def _prep_kernel(n_sigma, x_step, y_step, th,
                 pred_ref, im_ref, inst_ref, lab_ref, feat_ref, scal_ref):
    h = pl.program_id(1)
    c_total = pred_ref.shape[1]

    off = pred_ref[0, 0:2]                       # (2, TH, W) offsets
    seed_logit = pred_ref[0, 2 + n_sigma]        # (TH, W)
    logit0 = pred_ref[0, 3 + n_sigma]
    logit1 = pred_ref[0, 4 + n_sigma]
    rec = pred_ref[0, c_total - 3:c_total]       # (3, TH, W) reconstruction

    # in-kernel coordinate maps (replaces the (2,H,W) linspace input)
    shape2 = (off.shape[1], off.shape[2])
    col = jax.lax.broadcasted_iota(jnp.int32, shape2, 1).astype(jnp.float32)
    row = (jax.lax.broadcasted_iota(jnp.int32, shape2, 0)
           + h * th).astype(jnp.float32)
    xm = col * x_step
    ym = row * y_step

    # spatial embedding + seed map -> packed feature stack [emb_x, emb_y, seed]
    emb = jnp.tanh(off)
    seed = jax.nn.sigmoid(seed_logit)
    feat_ref[0, 0] = emb[0] + xm
    feat_ref[0, 1] = emb[1] + ym
    feat_ref[0, 2] = seed

    lab = lab_ref[0]
    inst = inst_ref[0]

    # background seed loss partial: sum_{label==0} seed^2
    bgf = (lab == 0).astype(jnp.float32)
    bg = jnp.sum(bgf * seed * seed)

    # reconstruction loss partials masked by instances > 0
    fgf = (inst > 0).astype(jnp.float32)
    diff2 = (im_ref[0] - rec) ** 2
    rsum = jnp.sum(diff2 * fgf[None])
    rcnt = jnp.sum(fgf) * 3.0

    # 2-class focal CE (balance=1, gamma=2)
    m = jnp.maximum(logit0, logit1)
    e0 = jnp.exp(logit0 - m)
    e1 = jnp.exp(logit1 - m)
    se = e0 + e1
    is1 = lab == 1
    pt = jnp.where(is1, e1, e0) / se
    logpt = jnp.where(is1, logit1, logit0) - (m + jnp.log(se))
    omp = 1.0 - pt
    focal = -(omp * omp) * logpt
    validf = (lab < 2).astype(jnp.float32)
    csum = jnp.sum(validf * focal)
    ccnt = jnp.sum(validf)

    # single lane-dense packed store of all per-tile scalars
    lane = jax.lax.broadcasted_iota(jnp.int32, scal_ref.shape, 3)
    packed = jnp.zeros(scal_ref.shape, jnp.float32)
    for k, v in enumerate((bg, rsum, rcnt, csum, ccnt)):
        packed = jnp.where(lane == k, v, packed)
    scal_ref[...] = packed


# -----------------------------------------------------------------------------
# Kernel 2: per-(sample, H-tile) per-instance partial sums (stats pass)
#   lanes: [cnt, sum(x*m), sum(y*m), sum(s0*m), sum(s1*m), sum(s0^2*m), sum(s1^2*m)]
# -----------------------------------------------------------------------------
def _stats_kernel(max_inst, x_step, y_step, th,
                  ids_ref, nid_ref, sig_ref, inst_ref, out_ref):
    b = pl.program_id(0)
    h = pl.program_id(1)
    nid = nid_ref[b]

    shape2 = (inst_ref.shape[1], inst_ref.shape[2])
    col = jax.lax.broadcasted_iota(jnp.int32, shape2, 1).astype(jnp.float32)
    rowc = (jax.lax.broadcasted_iota(jnp.int32, shape2, 0)
            + h * th).astype(jnp.float32)
    xm = col * x_step
    ym = rowc * y_step

    row_idx = jax.lax.broadcasted_iota(jnp.int32, (max_inst, 128), 0)
    lane_idx = jax.lax.broadcasted_iota(jnp.int32, (max_inst, 128), 1)

    # TODO(synk): reformulate as an MXU one-hot matmul; kept as a dynamic-trip
    # VPU loop (runs only over the real instance count) for lowering safety.
    def slot_body(i, acc):
        iid = ids_ref[b, i]
        m = (inst_ref[0] == iid).astype(jnp.float32)
        s0 = sig_ref[0, 0]
        s1 = sig_ref[0, 1]
        s0m = s0 * m
        s1m = s1 * m
        sums = (jnp.sum(m), jnp.sum(xm * m), jnp.sum(ym * m),
                jnp.sum(s0m), jnp.sum(s1m),
                jnp.sum(s0m * s0), jnp.sum(s1m * s1))
        vals = jnp.zeros((max_inst, 128), jnp.float32)
        for k, v in enumerate(sums):
            vals = jnp.where(lane_idx == k, v, vals)
        return acc + jnp.where(row_idx == i, vals, 0.0)

    acc0 = jnp.zeros((max_inst, 128), jnp.float32)
    acc = jax.lax.fori_loop(0, nid, slot_body, acc0)
    out_ref[0, 0] = acc


# -----------------------------------------------------------------------------
# Kernel 3: per-(sample, H-tile, instance-slot) gaussian dist map + reductions
#   feature/instance tiles stay resident across the (innermost) instance axis.
# -----------------------------------------------------------------------------
def _dist_kernel(ids_ref, nid_ref, cx_ref, cy_ref, s0_ref, s1_ref,
                 feat_ref, inst_ref, dist_ref, mask_ref, scal_ref):
    b = pl.program_id(0)
    i = pl.program_id(2)
    valid = i < nid_ref[b]

    @pl.when(valid)
    def _():
        iid = ids_ref[b, i]
        m = (inst_ref[0] == iid).astype(jnp.float32)
        cx = cx_ref[b, i]
        cy = cy_ref[b, i]
        s0 = s0_ref[b, i]
        s1 = s1_ref[b, i]

        ex = feat_ref[0, 0]
        ey = feat_ref[0, 1]
        seed = feat_ref[0, 2]

        d = (ex - cx) ** 2 * s0 + (ey - cy) ** 2 * s1
        dist = jnp.exp(-d)
        dist_ref[0, 0] = (2.0 * dist - 1.0).astype(dist_ref.dtype)
        mask_ref[0, 0] = m.astype(mask_ref.dtype)

        seedsum = jnp.sum(m * (seed - dist) ** 2)
        fg = (dist > 0.5).astype(jnp.float32)
        inter = jnp.sum(fg * m)
        fgsum = jnp.sum(fg)                     # union = fgsum + cnt - inter

        lane = jax.lax.broadcasted_iota(jnp.int32, scal_ref.shape, 3)
        packed = jnp.zeros(scal_ref.shape, jnp.float32)
        for k, v in enumerate((seedsum, inter, fgsum)):
            packed = jnp.where(lane == k, v, packed)
        scal_ref[...] = packed

    @pl.when(jnp.logical_not(valid))
    def _():
        dist_ref[...] = jnp.zeros_like(dist_ref)
        mask_ref[...] = jnp.zeros_like(mask_ref)
        scal_ref[...] = jnp.zeros_like(scal_ref)


# -----------------------------------------------------------------------------
# plain-JAX helpers (sort-based -> no clean Pallas equivalent)
# -----------------------------------------------------------------------------
def _lovasz_hinge_flat(logits, labels):
    logits = logits.astype(jnp.float32)
    labels = labels.astype(jnp.float32)
    signs = 2.0 * labels - 1.0
    errors = 1.0 - logits * signs
    order = jnp.argsort(-errors)
    errors_sorted = errors[order]
    gt_sorted = labels[order]
    gts = jnp.sum(gt_sorted)
    intersection = gts - jnp.cumsum(gt_sorted)
    union = gts + jnp.cumsum(1.0 - gt_sorted)
    jaccard = 1.0 - intersection / union
    grad = jnp.concatenate([jaccard[:1], jaccard[1:] - jaccard[:-1]])
    return jnp.dot(jnp.maximum(errors_sorted, 0.0), grad)


def _pick_row_tile(h, w, bytes_per_pixel, budget=8 << 20):
    """Largest power-of-two row tile (>=16 preferred) dividing h that fits budget."""
    if h % 8 != 0:
        return h                      # block == full dim is always legal
    for cand in (256, 128, 64, 32, 16, 8):
        if h % cand == 0 and cand * w * bytes_per_pixel <= budget:
            return cand
    return 8


_VMEM_LIMIT = 48 * 1024 * 1024        # < v7x 64 MiB physical, > v5e/v6e defaults


# -----------------------------------------------------------------------------
# Loss module
# -----------------------------------------------------------------------------
class MOTSSegClsRecLoss0226LightnPallas:
    def __init__(self, to_center=True, n_sigma=2, foreground_weight=200,
                 cls_ratio=1.0, focus_ratio=2.0, fg_center=False, mot17=False,
                 max_inst=25):
        assert to_center and not fg_center, "only default (to_center) path implemented"
        assert n_sigma == 2, "kernels specialize n_sigma=2"
        assert focus_ratio == 2.0, "kernels specialize focusing_param=2.0"
        self.n_sigma = n_sigma
        self.foreground_weight = float(foreground_weight)
        self.cls_ratio = float(cls_ratio)
        self.max_inst = int(max_inst)
        # torch.linspace(0, 2, 2048) / linspace(0, 1, 1024) step sizes
        self._x_step = 2.0 / 2047.0
        self._y_step = (2.0 / 2047.0) if mot17 else (1.0 / 1023.0)
        self._impl = jax.jit(self._loss_impl)

    # ---------------------------------------------------------------- jitted
    def _loss_impl(self, prediction, ims, instances, labels, seed_w,
                   w_inst, w_var, w_seed):
        B, C, H, W = prediction.shape
        n_sigma = self.n_sigma
        MI = self.max_inst
        x_step, y_step = self._x_step, self._y_step

        # -------- tile sizes from per-step VMEM byte budgets -----------------
        th_p = _pick_row_tile(H, W, 96)     # prep: pred+ims+inst+lab+feat+temps
        nh_p = H // th_p
        th_s = _pick_row_tile(H, W, 40)     # stats: sigma+inst+coord temps
        nh_s = H // th_s
        th_d = _pick_row_tile(H, W, 40)     # dist: feat+inst+bf16 outs+temps
        nh_d = H // th_d

        # -------- prep kernel: whole batch, tiled over H, pipelined ----------
        prep_call = pl.pallas_call(
            partial(_prep_kernel, n_sigma, x_step, y_step, th_p),
            out_shape=(jax.ShapeDtypeStruct((B, 3, H, W), jnp.float32),
                       jax.ShapeDtypeStruct((B, nh_p, 1, 128), jnp.float32)),
            grid=(B, nh_p),
            in_specs=[
                pl.BlockSpec((1, C, th_p, W), lambda b, h: (b, 0, h, 0)),
                pl.BlockSpec((1, 3, th_p, W), lambda b, h: (b, 0, h, 0)),
                pl.BlockSpec((1, th_p, W), lambda b, h: (b, h, 0)),
                pl.BlockSpec((1, th_p, W), lambda b, h: (b, h, 0)),
            ],
            out_specs=(
                pl.BlockSpec((1, 3, th_p, W), lambda b, h: (b, 0, h, 0)),
                pl.BlockSpec((1, 1, 1, 128), lambda b, h: (b, h, 0, 0)),
            ),
            compiler_params=pltpu.CompilerParams(
                dimension_semantics=("parallel", "parallel"),
                vmem_limit_bytes=_VMEM_LIMIT),
        )
        feat, prep_scal = prep_call(prediction, ims, instances, labels)

        bg_b = jnp.sum(prep_scal[:, :, 0, 0], axis=1)      # (B,)
        rsum_t = jnp.sum(prep_scal[:, :, 0, 1])
        rcnt_t = jnp.sum(prep_scal[:, :, 0, 2])
        csum_b = jnp.sum(prep_scal[:, :, 0, 3], axis=1)
        ccnt_b = jnp.sum(prep_scal[:, :, 0, 4], axis=1)

        # -------- device-side instance-id enumeration (no host sync) ---------
        # TODO(synk): torch uses randperm before truncation when a sample has
        # more than max_inst instances; deterministic (smallest-id) subset here.
        ids_rows, n_rows = [], []
        for b in range(B):
            u = jnp.unique(instances[b], size=MI + 1, fill_value=0)
            nz = u != 0
            order = jnp.argsort(jnp.logical_not(nz).astype(jnp.int32))
            ids_rows.append(u[order][:MI])
            n_rows.append(jnp.minimum(jnp.sum(nz), MI))
        ids = jnp.stack(ids_rows).astype(jnp.int32)          # (B, MI)
        n_ids = jnp.stack(n_rows).astype(jnp.int32)          # (B,)

        # -------- stats pass: per-tile per-slot masked sums (H-tiled) ---------
        stats_call = pl.pallas_call(
            partial(_stats_kernel, MI, x_step, y_step, th_s),
            out_shape=jax.ShapeDtypeStruct((B, nh_s, MI, 128), jnp.float32),
            grid_spec=pltpu.PrefetchScalarGridSpec(
                num_scalar_prefetch=2,
                grid=(B, nh_s),
                in_specs=[
                    # sigma channels 2:4 sliced straight from prediction
                    pl.BlockSpec((1, n_sigma, th_s, W),
                                 lambda b, h, ids_r, n_r: (b, 1, h, 0)),
                    pl.BlockSpec((1, th_s, W),
                                 lambda b, h, ids_r, n_r: (b, h, 0)),
                ],
                out_specs=pl.BlockSpec((1, 1, MI, 128),
                                       lambda b, h, ids_r, n_r: (b, h, 0, 0)),
            ),
            compiler_params=pltpu.CompilerParams(
                dimension_semantics=("parallel", "parallel"),
                vmem_limit_bytes=_VMEM_LIMIT),
        )
        stats_tiles = stats_call(ids, n_ids, prediction, instances)

        stats = jnp.sum(stats_tiles, axis=1)                 # (B, MI, 128)
        cnt = stats[..., 0]
        inv = 1.0 / jnp.maximum(cnt, 1.0)
        cx = stats[..., 1] * inv
        cy = stats[..., 2] * inv
        sm0 = stats[..., 3] * inv
        sm1 = stats[..., 4] * inv
        s0 = jnp.exp(10.0 * sm0)
        s1 = jnp.exp(10.0 * sm1)
        # sum(m*(sig-mean)^2) = sum(m*sig^2) - cnt*mean^2
        varterm = (jnp.maximum(stats[..., 5] - cnt * sm0 * sm0, 0.0)
                   + jnp.maximum(stats[..., 6] - cnt * sm1 * sm1, 0.0))

        # -------- dist pass: H-tiled, instance axis innermost (resident tiles)
        dist_call = pl.pallas_call(
            _dist_kernel,
            out_shape=(jax.ShapeDtypeStruct((B, MI, H, W), jnp.bfloat16),
                       jax.ShapeDtypeStruct((B, MI, H, W), jnp.bfloat16),
                       jax.ShapeDtypeStruct((B, MI * nh_d, 1, 128), jnp.float32)),
            grid_spec=pltpu.PrefetchScalarGridSpec(
                num_scalar_prefetch=2,
                grid=(B, nh_d, MI),
                in_specs=[
                    pl.BlockSpec(memory_space=pltpu.MemorySpace.SMEM),  # cx
                    pl.BlockSpec(memory_space=pltpu.MemorySpace.SMEM),  # cy
                    pl.BlockSpec(memory_space=pltpu.MemorySpace.SMEM),  # s0
                    pl.BlockSpec(memory_space=pltpu.MemorySpace.SMEM),  # s1
                    pl.BlockSpec((1, 3, th_d, W),
                                 lambda b, h, i, ids_r, n_r: (b, 0, h, 0)),
                    pl.BlockSpec((1, th_d, W),
                                 lambda b, h, i, ids_r, n_r: (b, h, 0)),
                ],
                out_specs=(
                    pl.BlockSpec((1, 1, th_d, W),
                                 lambda b, h, i, ids_r, n_r: (b, i, h, 0)),
                    pl.BlockSpec((1, 1, th_d, W),
                                 lambda b, h, i, ids_r, n_r: (b, i, h, 0)),
                    pl.BlockSpec((1, 1, 1, 128),
                                 lambda b, h, i, ids_r, n_r: (b, i * nh_d + h, 0, 0)),
                ),
            ),
            compiler_params=pltpu.CompilerParams(
                dimension_semantics=("parallel", "parallel", "parallel"),
                vmem_limit_bytes=_VMEM_LIMIT),
        )
        dist2m1, mask_out, dist_scal = dist_call(
            ids, n_ids, cx, cy, s0, s1, feat, instances)

        dsc = jnp.sum(dist_scal.reshape(B, MI, nh_d, 128), axis=2)   # (B, MI, 128)
        seedterm = dsc[..., 0]
        inter = dsc[..., 1]
        fgsum = dsc[..., 2]
        union = fgsum + cnt - inter

        slot_valid = (jnp.arange(MI)[None, :]
                      < n_ids[:, None]).astype(jnp.float32)   # (B, MI)
        obj_count = jnp.sum(slot_valid, axis=1)

        # lovasz hinge per instance slot (sort + cumsum kept in plain JAX)
        # TODO(synk): per-instance bbox cropping of the lovasz argsort not done.
        lov = jax.vmap(jax.vmap(_lovasz_hinge_flat))(
            dist2m1.reshape(B, MI, H * W),
            mask_out.reshape(B, MI, H * W))                   # (B, MI)

        denom = jnp.maximum(obj_count, 1.0)
        instance_loss_b = jnp.sum(slot_valid * lov, axis=1) / denom
        var_loss_b = jnp.sum(
            slot_valid * varterm / (2.0 * jnp.maximum(cnt, 1.0)), axis=1) / denom
        seed_loss_b = (bg_b + self.foreground_weight
                       * jnp.sum(slot_valid * seedterm, axis=1)) / float(H * W)

        # TODO(synk): FocalOHEMLoss source unavailable; mean-reduced focal CE
        # (balance=1, gamma=2) without OHEM hard-example selection.
        cls_b = jnp.where(ccnt_b > 0, csum_b / jnp.maximum(ccnt_b, 1.0), 0.0)
        cls_loss = jnp.sum(self.cls_ratio * cls_b * seed_w)

        loss = jnp.sum((w_inst * instance_loss_b + w_var * var_loss_b
                        + w_seed * seed_loss_b) * seed_w)
        res_loss = jnp.where(rcnt_t > 0, rsum_t / jnp.maximum(rcnt_t, 1.0), 0.0)

        total = loss / B + cls_loss / B + res_loss * 0.1
        focal_loss = cls_loss / B

        iou_vals = jnp.where(union > 0, inter / jnp.maximum(union, 1.0), 0.0)
        return total, focal_loss, iou_vals, slot_valid

    # ---------------------------------------------------------------- public
    def forward(self, prediction, ims, instances, labels,
                w_inst=1, w_var=10, w_seed=1, seed_w=None, iou=False,
                is_test=False):
        # TODO(synk): is_test branch (softmax-thresholded label pruning) not implemented.
        prediction = jnp.asarray(prediction, jnp.float32)
        ims = jnp.asarray(ims, jnp.float32)
        instances = jnp.asarray(instances, jnp.int32)
        labels = jnp.asarray(labels, jnp.int32)
        B = prediction.shape[0]
        if seed_w is None:
            seed_w = jnp.ones((B,), jnp.float32)
        else:
            seed_w = jnp.asarray(seed_w, jnp.float32)

        total, focal, iou_vals, slot_valid = self._impl(
            prediction, ims, instances, labels, seed_w,
            jnp.asarray(w_inst, jnp.float32),
            jnp.asarray(w_var, jnp.float32),
            jnp.asarray(w_seed, jnp.float32))

        iou_meter = []
        if iou:
            iv = np.asarray(iou_vals).reshape(-1)
            vm = np.asarray(slot_valid).reshape(-1)
            iou_meter = [float(v) for v, m in zip(iv, vm) if m > 0.5]
        return total, focal, iou_meter


# -----------------------------------------------------------------------------
# main
# -----------------------------------------------------------------------------
if __name__ == "__main__":
    key = jax.random.PRNGKey(0)
    B, C, H, W = 2, 10, 16, 128   # C = 2 (emb) + 2 (sigma) + 1 (seed) + 2 (cls) + 3 (rec)

    k1, k2 = jax.random.split(key)
    prediction = 0.5 * jax.random.normal(k1, (B, C, H, W), dtype=jnp.float32)
    ims = jax.random.uniform(k2, (B, 3, H, W), dtype=jnp.float32)

    instances_np = np.zeros((B, H, W), np.int32)
    labels_np = np.zeros((B, H, W), np.int32)
    instances_np[0, 2:8, 10:40] = 1
    instances_np[0, 9:15, 60:110] = 2
    instances_np[1, 4:12, 20:90] = 1
    labels_np[instances_np > 0] = 1
    labels_np[:, 0:2, 0:8] = 2         # a few "ignore" pixels (label == 2)

    loss_fn = MOTSSegClsRecLoss0226LightnPallas()
    total, focal, iou_meter = loss_fn.forward(
        prediction, ims, jnp.asarray(instances_np), jnp.asarray(labels_np),
        iou=True)
    total = jax.block_until_ready(total)
    focal = jax.block_until_ready(focal)
    assert np.isfinite(float(total)) and np.isfinite(float(focal))
    assert all(np.isfinite(v) for v in iou_meter)
    print("KERNEL_OK")
</pallas_src>

<mosaic_0001>
module attributes {stable_mosaic.version = 11 : i64} {
  func.func private @main(%arg0: i32) attributes {dimension_semantics = [#tpu.dimension_semantics<core_parallel>], iteration_bounds = array<i64: 2>, tpu.core_type = #tpu.core_type<sc_scalar_subcore>, window_params = []} {
    return
  }
}

module attributes {stable_mosaic.version = 11 : i64} {
  func.func private @main(%arg0: i32) attributes {dimension_semantics = [#tpu.dimension_semantics<core_parallel>], iteration_bounds = array<i64: 2>, tpu.core_type = #tpu.core_type<sc_scalar_subcore>, window_params = []} {
    return
  }
}

module attributes {stable_mosaic.version = 11 : i64} {
  func.func @_prep_kernel(%arg0: i32, %arg1: i32, %arg2: memref<1x10x16x128xf32, #tpu.memory_space<vmem>>, %arg3: memref<1x3x16x128xf32, #tpu.memory_space<vmem>>, %arg4: memref<1x16x128xi32, #tpu.memory_space<vmem>>, %arg5: memref<1x16x128xi32, #tpu.memory_space<vmem>>, %arg6: memref<1x3x16x128xf32, #tpu.memory_space<vmem>>, %arg7: memref<1x1x1x128xf32, #tpu.memory_space<vmem>>) attributes {dimension_semantics = [#tpu.dimension_semantics<parallel>, #tpu.dimension_semantics<parallel>], iteration_bounds = array<i64: 2, 1>, scalar_prefetch = 0 : i64, scratch_operands = 0 : i64, tpu.core_type = #tpu.core_type<tc>, window_params = [{transform_indices = @transform_0, window_bounds = array<i64: 1, 10, 16, 128>}, {transform_indices = @transform_1, window_bounds = array<i64: 1, 3, 16, 128>}, {transform_indices = @transform_2, window_bounds = array<i64: 1, 16, 128>}, {transform_indices = @transform_3, window_bounds = array<i64: 1, 16, 128>}, {transform_indices = @transform_4, window_bounds = array<i64: 1, 3, 16, 128>}, {transform_indices = @transform_5, window_bounds = array<i64: 1, 1, 1, 128>}]} {
    %c0 = arith.constant 0 : index
    %c0_0 = arith.constant 0 : index
    %c0_1 = arith.constant 0 : index
    %c0_2 = arith.constant 0 : index
    %0 = vector.load %arg2[%c0, %c0_0, %c0_1, %c0_2] : memref<1x10x16x128xf32, #tpu.memory_space<vmem>>, vector<1x2x16x128xf32>
    %1 = vector.shape_cast %0 : vector<1x2x16x128xf32> to vector<2x16x128xf32>
    %c0_3 = arith.constant 0 : index
    %c4 = arith.constant 4 : index
    %c0_4 = arith.constant 0 : index
    %c0_5 = arith.constant 0 : index
    %2 = vector.load %arg2[%c0_3, %c4, %c0_4, %c0_5] : memref<1x10x16x128xf32, #tpu.memory_space<vmem>>, vector<1x1x16x128xf32>
    %3 = vector.shape_cast %2 : vector<1x1x16x128xf32> to vector<16x128xf32>
    %c0_6 = arith.constant 0 : index
    %c5 = arith.constant 5 : index
    %c0_7 = arith.constant 0 : index
    %c0_8 = arith.constant 0 : index
    %4 = vector.load %arg2[%c0_6, %c5, %c0_7, %c0_8] : memref<1x10x16x128xf32, #tpu.memory_space<vmem>>, vector<1x1x16x128xf32>
    %5 = vector.shape_cast %4 : vector<1x1x16x128xf32> to vector<16x128xf32>
    %c0_9 = arith.constant 0 : index
    %c6 = arith.constant 6 : index
    %c0_10 = arith.constant 0 : index
    %c0_11 = arith.constant 0 : index
    %6 = vector.load %arg2[%c0_9, %c6, %c0_10, %c0_11] : memref<1x10x16x128xf32, #tpu.memory_space<vmem>>, vector<1x1x16x128xf32>
    %7 = vector.shape_cast %6 : vector<1x1x16x128xf32> to vector<16x128xf32>
    %c0_12 = arith.constant 0 : index
    %c7 = arith.constant 7 : index
    %c0_13 = arith.constant 0 : index
    %c0_14 = arith.constant 0 : index
    %8 = vector.load %arg2[%c0_12, %c7, %c0_13, %c0_14] : memref<1x10x16x128xf32, #tpu.memory_space<vmem>>, vector<1x3x16x128xf32>
    %9 = vector.shape_cast %8 : vector<1x3x16x128xf32> to vector<3x16x128xf32>
    %10 = tpu.iota {dimensions = array<i32: 1>} : vector<16x128xi32>
    %11 = arith.sitofp %10 : vector<16x128xi32> to vector<16x128xf32>
    %12 = tpu.iota {dimensions = array<i32: 0>} : vector<16x128xi32>
    %c16_i32 = arith.constant 16 : i32
    %13 = arith.muli %arg1, %c16_i32 : i32
    %14 = vector.broadcast %13 : i32 to vector<16x128xi32>
    %15 = arith.addi %12, %14 : vector<16x128xi32>
    %16 = arith.sitofp %15 : vector<16x128xi32> to vector<16x128xf32>
    %cst = arith.constant 9.77039569E-4 : f32
    %17 = vector.broadcast %cst : f32 to vector<16x128xf32>
    %18 = arith.mulf %11, %17 : vector<16x128xf32>
    %cst_15 = arith.constant 9.77517105E-4 : f32
    %19 = vector.broadcast %cst_15 : f32 to vector<16x128xf32>
    %20 = arith.mulf %16, %19 : vector<16x128xf32>
    %21 = math.tanh %1 : vector<2x16x128xf32>
    %22 = arith.negf %3 : vector<16x128xf32>
    %23 = math.exp %22 : vector<16x128xf32>
    %cst_16 = arith.constant 1.000000e+00 : f32
    %24 = vector.broadcast %cst_16 : f32 to vector<16x128xf32>
    %25 = arith.addf %24, %23 : vector<16x128xf32>
    %26 = arith.divf %24, %25 : vector<16x128xf32>
    %27 = vector.extract_strided_slice %21 {offsets = [0, 0, 0], sizes = [1, 16, 128], strides = [1, 1, 1]} : vector<2x16x128xf32> to vector<1x16x128xf32>
    %28 = vector.shape_cast %27 : vector<1x16x128xf32> to vector<16x128xf32>
    %29 = arith.addf %28, %18 : vector<16x128xf32>
    %c0_17 = arith.constant 0 : index
    %c0_18 = arith.constant 0 : index
    %c0_19 = arith.constant 0 : index
    %c0_20 = arith.constant 0 : index
    %30 = vector.load %arg6[%c0_17, %c0_18, %c0_19, %c0_20] : memref<1x3x16x128xf32, #tpu.memory_space<vmem>>, vector<1x1x16x128xf32>
    %31 = vector.shape_cast %30 : vector<1x1x16x128xf32> to vector<16x128xf32>
    %32 = vector.shape_cast %29 : vector<16x128xf32> to vector<1x1x16x128xf32>
    tpu.vector_store %arg6[%c0_17, %c0_18, %c0_19, %c0_20], %32 {strides = array<i32>} : memref<1x3x16x128xf32, #tpu.memory_space<vmem>>, vector<1x1x16x128xf32>,
    %33 = vector.extract_strided_slice %21 {offsets = [1, 0, 0], sizes = [1, 16, 128], strides = [1, 1, 1]} : vector<2x16x128xf32> to vector<1x16x128xf32>
    %34 = vector.shape_cast %33 : vector<1x16x128xf32> to vector<16x128xf32>
    %35 = arith.addf %34, %20 : vector<16x128xf32>
    %c0_21 = arith.constant 0 : index
    %c1 = arith.constant 1 : index
    %c0_22 = arith.constant 0 : index
    %c0_23 = arith.constant 0 : index
    %36 = vector.load %arg6[%c0_21, %c1, %c0_22, %c0_23] : memref<1x3x16x128xf32, #tpu.memory_space<vmem>>, vector<1x1x16x128xf32>
    %37 = vector.shape_cast %36 : vector<1x1x16x128xf32> to vector<16x128xf32>
    %38 = vector.shape_cast %35 : vector<16x128xf32> to vector<1x1x16x128xf32>
    tpu.vector_store %arg6[%c0_21, %c1, %c0_22, %c0_23], %38 {strides = array<i32>} : memref<1x3x16x128xf32, #tpu.memory_space<vmem>>, vector<1x1x16x128xf32>,
    %c0_24 = arith.constant 0 : index
    %c2 = arith.constant 2 : index
    %c0_25 = arith.constant 0 : index
    %c0_26 = arith.constant 0 : index
    %39 = vector.load %arg6[%c0_24, %c2, %c0_25, %c0_26] : memref<1x3x16x128xf32, #tpu.memory_space<vmem>>, vector<1x1x16x128xf32>
    %40 = vector.shape_cast %39 : vector<1x1x16x128xf32> to vector<16x128xf32>
    %41 = vector.shape_cast %26 : vector<16x128xf32> to vector<1x1x16x128xf32>
    tpu.vector_store %arg6[%c0_24, %c2, %c0_25, %c0_26], %41 {strides = array<i32>} : memref<1x3x16x128xf32, #tpu.memory_space<vmem>>, vector<1x1x16x128xf32>,
    %c0_27 = arith.constant 0 : index
    %c0_28 = arith.constant 0 : index
    %c0_29 = arith.constant 0 : index
    %42 = vector.load %arg5[%c0_27, %c0_28, %c0_29] : memref<1x16x128xi32, #tpu.memory_space<vmem>>, vector<1x16x128xi32>
    %43 = vector.shape_cast %42 : vector<1x16x128xi32> to vector<16x128xi32>
    %c0_30 = arith.constant 0 : index
    %c0_31 = arith.constant 0 : index
    %c0_32 = arith.constant 0 : index
    %44 = vector.load %arg4[%c0_30, %c0_31, %c0_32] : memref<1x16x128xi32, #tpu.memory_space<vmem>>, vector<1x16x128xi32>
    %45 = vector.shape_cast %44 : vector<1x16x128xi32> to vector<16x128xi32>
    %c0_i32 = arith.constant 0 : i32
    %46 = vector.broadcast %c0_i32 : i32 to vector<16x128xi32>
    %47 = arith.cmpi eq, %43, %46 : vector<16x128xi32>
    %48 = arith.extui %47 : vector<16x128xi1> to vector<16x128xi32>
    %49 = arith.sitofp %48 : vector<16x128xi32> to vector<16x128xf32>
    %50 = arith.mulf %49, %26 : vector<16x128xf32>
    %51 = arith.mulf %50, %26 : vector<16x128xf32>
    %52 = vector.shape_cast %51 : vector<16x128xf32> to vector<1x16x128xf32>
    %cst_33 = arith.constant dense<0.000000e+00> : vector<1xf32>
    %53 = vector.multi_reduction <add>, %52, %cst_33 [1, 2] : vector<1x16x128xf32> to vector<1xf32>
    %54 = vector.shape_cast %53 : vector<1xf32> to vector<1x1x1xf32>
    %55 = vector.extract %54[0, 0, 0] : f32 from vector<1x1x1xf32>
    %c0_i32_34 = arith.constant 0 : i32
    %56 = vector.broadcast %c0_i32_34 : i32 to vector<16x128xi32>
    %57 = arith.cmpi sgt, %45, %56 : vector<16x128xi32>
    %58 = arith.extui %57 : vector<16x128xi1> to vector<16x128xi32>
    %59 = arith.sitofp %58 : vector<16x128xi32> to vector<16x128xf32>
    %c0_35 = arith.constant 0 : index
    %c0_36 = arith.constant 0 : index
    %c0_37 = arith.constant 0 : index
    %c0_38 = arith.constant 0 : index
    %60 = vector.load %arg3[%c0_35, %c0_36, %c0_37, %c0_38] : memref<1x3x16x128xf32, #tpu.memory_space<vmem>>, vector<1x3x16x128xf32>
    %61 = vector.shape_cast %60 : vector<1x3x16x128xf32> to vector<3x16x128xf32>
    %62 = arith.subf %61, %9 : vector<3x16x128xf32>
    %63 = arith.mulf %62, %62 : vector<3x16x128xf32>
    %64 = vector.shape_cast %59 : vector<16x128xf32> to vector<1x16x128xf32>
    %65 = vector.broadcast %64 : vector<1x16x128xf32> to vector<3x16x128xf32>
    %66 = arith.mulf %63, %65 : vector<3x16x128xf32>
    %67 = vector.shape_cast %66 : vector<3x16x128xf32> to vector<1x3x16x128xf32>
    %cst_39 = arith.constant dense<0.000000e+00> : vector<1xf32>
    %68 = vector.multi_reduction <add>, %67, %cst_39 [1, 2, 3] : vector<1x3x16x128xf32> to vector<1xf32>
    %69 = vector.shape_cast %68 : vector<1xf32> to vector<1x1x1x1xf32>
    %70 = vector.extract %69[0, 0, 0, 0] : f32 from vector<1x1x1x1xf32>
    %71 = vector.shape_cast %59 : vector<16x128xf32> to vector<1x16x128xf32>
    %cst_40 = arith.constant dense<0.000000e+00> : vector<1xf32>
    %72 = vector.multi_reduction <add>, %71, %cst_40 [1, 2] : vector<1x16x128xf32> to vector<1xf32>
    %73 = vector.shape_cast %72 : vector<1xf32> to vector<1x1x1xf32>
    %74 = vector.extract %73[0, 0, 0] : f32 from vector<1x1x1xf32>
    %cst_41 = arith.constant 3.000000e+00 : f32
    %75 = arith.mulf %74, %cst_41 : f32
    %76 = arith.maximumf %5, %7 : vector<16x128xf32>
    %77 = arith.subf %5, %76 : vector<16x128xf32>
    %78 = math.exp %77 : vector<16x128xf32>
    %79 = arith.subf %7, %76 : vector<16x128xf32>
    %80 = math.exp %79 : vector<16x128xf32>
    %81 = arith.addf %78, %80 : vector<16x128xf32>
    %c1_i32 = arith.constant 1 : i32
    %82 = vector.broadcast %c1_i32 : i32 to vector<16x128xi32>
    %83 = arith.cmpi eq, %43, %82 : vector<16x128xi32>
    %84 = arith.select %83, %80, %78 : vector<16x128xi1>, vector<16x128xf32>
    %85 = arith.divf %84, %81 : vector<16x128xf32>
    %86 = arith.select %83, %7, %5 : vector<16x128xi1>, vector<16x128xf32>
    %87 = math.log %81 : vector<16x128xf32>
    %88 = arith.addf %76, %87 : vector<16x128xf32>
    %89 = arith.subf %86, %88 : vector<16x128xf32>
    %cst_42 = arith.constant 1.000000e+00 : f32
    %90 = vector.broadcast %cst_42 : f32 to vector<16x128xf32>
    %91 = arith.subf %90, %85 : vector<16x128xf32>
    %92 = arith.mulf %91, %91 : vector<16x128xf32>
    %cst_43 = arith.constant 0.000000e+00 : f32
    %93 = vector.broadcast %cst_43 : f32 to vector<16x128xf32>
    %94 = arith.subf %93, %92 : vector<16x128xf32>
    %95 = arith.mulf %94, %89 : vector<16x128xf32>
    %c2_i32 = arith.constant 2 : i32
    %96 = vector.broadcast %c2_i32 : i32 to vector<16x128xi32>
    %97 = arith.cmpi slt, %43, %96 : vector<16x128xi32>
    %98 = arith.extui %97 : vector<16x128xi1> to vector<16x128xi32>
    %99 = arith.sitofp %98 : vector<16x128xi32> to vector<16x128xf32>
    %100 = arith.mulf %99, %95 : vector<16x128xf32>
    %101 = vector.shape_cast %100 : vector<16x128xf32> to vector<1x16x128xf32>
    %cst_44 = arith.constant dense<0.000000e+00> : vector<1xf32>
    %102 = vector.multi_reduction <add>, %101, %cst_44 [1, 2] : vector<1x16x128xf32> to vector<1xf32>
    %103 = vector.shape_cast %102 : vector<1xf32> to vector<1x1x1xf32>
    %104 = vector.extract %103[0, 0, 0] : f32 from vector<1x1x1xf32>
    %105 = vector.shape_cast %99 : vector<16x128xf32> to vector<1x16x128xf32>
    %cst_45 = arith.constant dense<0.000000e+00> : vector<1xf32>
    %106 = vector.multi_reduction <add>, %105, %cst_45 [1, 2] : vector<1x16x128xf32> to vector<1xf32>
    %107 = vector.shape_cast %106 : vector<1xf32> to vector<1x1x1xf32>
    %108 = vector.extract %107[0, 0, 0] : f32 from vector<1x1x1xf32>
    %109 = tpu.iota {dimensions = array<i32: 3>} : vector<1x1x1x128xi32>
    %cst_46 = arith.constant 0.000000e+00 : f32
    %110 = vector.broadcast %cst_46 : f32 to vector<1x1x1x128xf32>
    %c0_i32_47 = arith.constant 0 : i32
    %111 = vector.broadcast %c0_i32_47 : i32 to vector<1x1x1x128xi32>
    %112 = arith.cmpi eq, %109, %111 : vector<1x1x1x128xi32>
    %113 = vector.broadcast %55 : f32 to vector<1x1x1x128xf32>
    %114 = arith.select %112, %113, %110 : vector<1x1x1x128xi1>, vector<1x1x1x128xf32>
    %c1_i32_48 = arith.constant 1 : i32
    %115 = vector.broadcast %c1_i32_48 : i32 to vector<1x1x1x128xi32>
    %116 = arith.cmpi eq, %109, %115 : vector<1x1x1x128xi32>
    %117 = vector.broadcast %70 : f32 to vector<1x1x1x128xf32>
    %118 = arith.select %116, %117, %114 : vector<1x1x1x128xi1>, vector<1x1x1x128xf32>
    %c2_i32_49 = arith.constant 2 : i32
    %119 = vector.broadcast %c2_i32_49 : i32 to vector<1x1x1x128xi32>
    %120 = arith.cmpi eq, %109, %119 : vector<1x1x1x128xi32>
    %121 = vector.broadcast %75 : f32 to vector<1x1x1x128xf32>
    %122 = arith.select %120, %121, %118 : vector<1x1x1x128xi1>, vector<1x1x1x128xf32>
    %c3_i32 = arith.constant 3 : i32
    %123 = vector.broadcast %c3_i32 : i32 to vector<1x1x1x128xi32>
    %124 = arith.cmpi eq, %109, %123 : vector<1x1x1x128xi32>
    %125 = vector.broadcast %104 : f32 to vector<1x1x1x128xf32>
    %126 = arith.select %124, %125, %122 : vector<1x1x1x128xi1>, vector<1x1x1x128xf32>
    %c4_i32 = arith.constant 4 : i32
    %127 = vector.broadcast %c4_i32 : i32 to vector<1x1x1x128xi32>
    %128 = arith.cmpi eq, %109, %127 : vector<1x1x1x128xi32>
    %129 = vector.broadcast %108 : f32 to vector<1x1x1x128xf32>
    %130 = arith.select %128, %129, %126 : vector<1x1x1x128xi1>, vector<1x1x1x128xf32>
    %c0_50 = arith.constant 0 : index
    %c0_51 = arith.constant 0 : index
    %c0_52 = arith.constant 0 : index
    %c0_53 = arith.constant 0 : index
    %131 = vector.load %arg7[%c0_50, %c0_51, %c0_52, %c0_53] : memref<1x1x1x128xf32, #tpu.memory_space<vmem>>, vector<1x1x1x128xf32>
    tpu.vector_store %arg7[%c0_50, %c0_51, %c0_52, %c0_53], %130 {strides = array<i32>} : memref<1x1x1x128xf32, #tpu.memory_space<vmem>>, vector<1x1x1x128xf32>,
    return
  }
  func.func @transform_0(%arg0: i32, %arg1: i32) -> (i32, i32, i32, i32) {
    %c0_i32 = arith.constant 0 : i32
    %c0_i32_0 = arith.constant 0 : i32
    %c0_i32_1 = arith.constant 0 : i32
    return %arg0, %c0_i32, %arg1, %c0_i32_0 : i32, i32, i32, i32
  }
  func.func @transform_1(%arg0: i32, %arg1: i32) -> (i32, i32, i32, i32) {
    %c0_i32 = arith.constant 0 : i32
    %c0_i32_0 = arith.constant 0 : i32
    %c0_i32_1 = arith.constant 0 : i32
    return %arg0, %c0_i32, %arg1, %c0_i32_0 : i32, i32, i32, i32
  }
  func.func @transform_2(%arg0: i32, %arg1: i32) -> (i32, i32, i32) {
    %c0_i32 = arith.constant 0 : i32
    %c0_i32_0 = arith.constant 0 : i32
    return %arg0, %arg1, %c0_i32 : i32, i32, i32
  }
  func.func @transform_3(%arg0: i32, %arg1: i32) -> (i32, i32, i32) {
    %c0_i32 = arith.constant 0 : i32
    %c0_i32_0 = arith.constant 0 : i32
    return %arg0, %arg1, %c0_i32 : i32, i32, i32
  }
  func.func @transform_4(%arg0: i32, %arg1: i32) -> (i32, i32, i32, i32) {
    %c0_i32 = arith.constant 0 : i32
    %c0_i32_0 = arith.constant 0 : i32
    %c0_i32_1 = arith.constant 0 : i32
    return %arg0, %c0_i32, %arg1, %c0_i32_0 : i32, i32, i32, i32
  }
  func.func @transform_5(%arg0: i32, %arg1: i32) -> (i32, i32, i32, i32) {
    %c0_i32 = arith.constant 0 : i32
    %c0_i32_0 = arith.constant 0 : i32
    %c0_i32_1 = arith.constant 0 : i32
    return %arg0, %arg1, %c0_i32, %c0_i32_0 : i32, i32, i32, i32
  }
}

module attributes {stable_mosaic.version = 11 : i64} {
  func.func @_stats_kernel(%arg0: i32, %arg1: i32, %arg2: memref<2x25xi32, #tpu.memory_space<smem>>, %arg3: memref<2xi32, #tpu.memory_space<smem>>, %arg4: memref<1x2x16x128xf32, #tpu.memory_space<vmem>>, %arg5: memref<1x16x128xi32, #tpu.memory_space<vmem>>, %arg6: memref<1x1x25x128xf32, #tpu.memory_space<vmem>>) attributes {dimension_semantics = [#tpu.dimension_semantics<parallel>, #tpu.dimension_semantics<parallel>], iteration_bounds = array<i64: 2, 1>, scalar_prefetch = 2 : i64, scratch_operands = 0 : i64, tpu.core_type = #tpu.core_type<tc>, window_params = [{transform_indices = @transform_0, window_bounds = array<i64: 1, 2, 16, 128>}, {transform_indices = @transform_1, window_bounds = array<i64: 1, 16, 128>}, {transform_indices = @transform_2, window_bounds = array<i64: 1, 1, 25, 128>}]} {
    %0 = arith.index_cast %arg0 : i32 to index
    %1 = memref.load %arg3[%0] : memref<2xi32, #tpu.memory_space<smem>>
    %2 = tpu.iota {dimensions = array<i32: 1>} : vector<16x128xi32>
    %3 = arith.sitofp %2 : vector<16x128xi32> to vector<16x128xf32>
    %4 = tpu.iota {dimensions = array<i32: 0>} : vector<16x128xi32>
    %c16_i32 = arith.constant 16 : i32
    %5 = arith.muli %arg1, %c16_i32 : i32
    %6 = vector.broadcast %5 : i32 to vector<16x128xi32>
    %7 = arith.addi %4, %6 : vector<16x128xi32>
    %8 = arith.sitofp %7 : vector<16x128xi32> to vector<16x128xf32>
    %cst = arith.constant 9.77039569E-4 : f32
    %9 = vector.broadcast %cst : f32 to vector<16x128xf32>
    %10 = arith.mulf %3, %9 : vector<16x128xf32>
    %cst_0 = arith.constant 9.77517105E-4 : f32
    %11 = vector.broadcast %cst_0 : f32 to vector<16x128xf32>
    %12 = arith.mulf %8, %11 : vector<16x128xf32>
    %13 = tpu.iota {dimensions = array<i32: 0>} : vector<25x128xi32>
    %14 = tpu.iota {dimensions = array<i32: 1>} : vector<25x128xi32>
    %cst_1 = arith.constant 0.000000e+00 : f32
    %15 = vector.broadcast %cst_1 : f32 to vector<25x128xf32>
    %c0_i32 = arith.constant 0 : i32
    %16 = arith.subi %1, %c0_i32 : i32
    %17 = arith.addi %c0_i32, %16 : i32
    %c1_i32 = arith.constant 1 : i32
    %18 = scf.for %arg7 = %c0_i32 to %17 step %c1_i32 iter_args(%arg8 = %15) -> (vector<25x128xf32>)  : i32 {
      %22 = arith.index_cast %arg0 : i32 to index
      %23 = arith.index_cast %arg7 : i32 to index
      %24 = memref.load %arg2[%22, %23] : memref<2x25xi32, #tpu.memory_space<smem>>
      %c0_5 = arith.constant 0 : index
      %c0_6 = arith.constant 0 : index
      %c0_7 = arith.constant 0 : index
      %25 = vector.load %arg5[%c0_5, %c0_6, %c0_7] : memref<1x16x128xi32, #tpu.memory_space<vmem>>, vector<1x16x128xi32>
      %26 = vector.shape_cast %25 : vector<1x16x128xi32> to vector<16x128xi32>
      %27 = vector.broadcast %24 : i32 to vector<16x128xi32>
      %28 = arith.cmpi eq, %26, %27 : vector<16x128xi32>
      %29 = arith.extui %28 : vector<16x128xi1> to vector<16x128xi32>
      %30 = arith.sitofp %29 : vector<16x128xi32> to vector<16x128xf32>
      %c0_8 = arith.constant 0 : index
      %c0_9 = arith.constant 0 : index
      %c0_10 = arith.constant 0 : index
      %c0_11 = arith.constant 0 : index
      %31 = vector.load %arg4[%c0_8, %c0_9, %c0_10, %c0_11] : memref<1x2x16x128xf32, #tpu.memory_space<vmem>>, vector<1x1x16x128xf32>
      %32 = vector.shape_cast %31 : vector<1x1x16x128xf32> to vector<16x128xf32>
      %c0_12 = arith.constant 0 : index
      %c1 = arith.constant 1 : index
      %c0_13 = arith.constant 0 : index
      %c0_14 = arith.constant 0 : index
      %33 = vector.load %arg4[%c0_12, %c1, %c0_13, %c0_14] : memref<1x2x16x128xf32, #tpu.memory_space<vmem>>, vector<1x1x16x128xf32>
      %34 = vector.shape_cast %33 : vector<1x1x16x128xf32> to vector<16x128xf32>
      %35 = arith.mulf %32, %30 : vector<16x128xf32>
      %36 = arith.mulf %34, %30 : vector<16x128xf32>
      %37 = vector.shape_cast %30 : vector<16x128xf32> to vector<1x16x128xf32>
      %cst_15 = arith.constant dense<0.000000e+00> : vector<1xf32>
      %38 = vector.multi_reduction <add>, %37, %cst_15 [1, 2] : vector<1x16x128xf32> to vector<1xf32>
      %39 = vector.shape_cast %38 : vector<1xf32> to vector<1x1x1xf32>
      %40 = vector.extract %39[0, 0, 0] : f32 from vector<1x1x1xf32>
      %41 = arith.mulf %10, %30 : vector<16x128xf32>
      %42 = vector.shape_cast %41 : vector<16x128xf32> to vector<1x16x128xf32>
      %cst_16 = arith.constant dense<0.000000e+00> : vector<1xf32>
      %43 = vector.multi_reduction <add>, %42, %cst_16 [1, 2] : vector<1x16x128xf32> to vector<1xf32>
      %44 = vector.shape_cast %43 : vector<1xf32> to vector<1x1x1xf32>
      %45 = vector.extract %44[0, 0, 0] : f32 from vector<1x1x1xf32>
      %46 = arith.mulf %12, %30 : vector<16x128xf32>
      %47 = vector.shape_cast %46 : vector<16x128xf32> to vector<1x16x128xf32>
      %cst_17 = arith.constant dense<0.000000e+00> : vector<1xf32>
      %48 = vector.multi_reduction <add>, %47, %cst_17 [1, 2] : vector<1x16x128xf32> to vector<1xf32>
      %49 = vector.shape_cast %48 : vector<1xf32> to vector<1x1x1xf32>
      %50 = vector.extract %49[0, 0, 0] : f32 from vector<1x1x1xf32>
      %51 = vector.shape_cast %35 : vector<16x128xf32> to vector<1x16x128xf32>
      %cst_18 = arith.constant dense<0.000000e+00> : vector<1xf32>
      %52 = vector.multi_reduction <add>, %51, %cst_18 [1, 2] : vector<1x16x128xf32> to vector<1xf32>
      %53 = vector.shape_cast %52 : vector<1xf32> to vector<1x1x1xf32>
      %54 = vector.extract %53[0, 0, 0] : f32 from vector<1x1x1xf32>
      %55 = vector.shape_cast %36 : vector<16x128xf32> to vector<1x16x128xf32>
      %cst_19 = arith.constant dense<0.000000e+00> : vector<1xf32>
      %56 = vector.multi_reduction <add>, %55, %cst_19 [1, 2] : vector<1x16x128xf32> to vector<1xf32>
      %57 = vector.shape_cast %56 : vector<1xf32> to vector<1x1x1xf32>
      %58 = vector.extract %57[0, 0, 0] : f32 from vector<1x1x1xf32>
      %59 = arith.mulf %35, %32 : vector<16x128xf32>
      %60 = vector.shape_cast %59 : vector<16x128xf32> to vector<1x16x128xf32>
      %cst_20 = arith.constant dense<0.000000e+00> : vector<1xf32>
      %61 = vector.multi_reduction <add>, %60, %cst_20 [1, 2] : vector<1x16x128xf32> to vector<1xf32>
      %62 = vector.shape_cast %61 : vector<1xf32> to vector<1x1x1xf32>
      %63 = vector.extract %62[0, 0, 0] : f32 from vector<1x1x1xf32>
      %64 = arith.mulf %36, %34 : vector<16x128xf32>
      %65 = vector.shape_cast %64 : vector<16x128xf32> to vector<1x16x128xf32>
      %cst_21 = arith.constant dense<0.000000e+00> : vector<1xf32>
      %66 = vector.multi_reduction <add>, %65, %cst_21 [1, 2] : vector<1x16x128xf32> to vector<1xf32>
      %67 = vector.shape_cast %66 : vector<1xf32> to vector<1x1x1xf32>
      %68 = vector.extract %67[0, 0, 0] : f32 from vector<1x1x1xf32>
      %cst_22 = arith.constant 0.000000e+00 : f32
      %69 = vector.broadcast %cst_22 : f32 to vector<25x128xf32>
      %c0_i32_23 = arith.constant 0 : i32
      %70 = vector.broadcast %c0_i32_23 : i32 to vector<25x128xi32>
      %71 = arith.cmpi eq, %14, %70 : vector<25x128xi32>
      %72 = vector.broadcast %40 : f32 to vector<25x128xf32>
      %73 = arith.select %71, %72, %69 : vector<25x128xi1>, vector<25x128xf32>
      %c1_i32_24 = arith.constant 1 : i32
      %74 = vector.broadcast %c1_i32_24 : i32 to vector<25x128xi32>
      %75 = arith.cmpi eq, %14, %74 : vector<25x128xi32>
      %76 = vector.broadcast %45 : f32 to vector<25x128xf32>
      %77 = arith.select %75, %76, %73 : vector<25x128xi1>, vector<25x128xf32>
      %c2_i32 = arith.constant 2 : i32
      %78 = vector.broadcast %c2_i32 : i32 to vector<25x128xi32>
      %79 = arith.cmpi eq, %14, %78 : vector<25x128xi32>
      %80 = vector.broadcast %50 : f32 to vector<25x128xf32>
      %81 = arith.select %79, %80, %77 : vector<25x128xi1>, vector<25x128xf32>
      %c3_i32 = arith.constant 3 : i32
      %82 = vector.broadcast %c3_i32 : i32 to vector<25x128xi32>
      %83 = arith.cmpi eq, %14, %82 : vector<25x128xi32>
      %84 = vector.broadcast %54 : f32 to vector<25x128xf32>
      %85 = arith.select %83, %84, %81 : vector<25x128xi1>, vector<25x128xf32>
      %c4_i32 = arith.constant 4 : i32
      %86 = vector.broadcast %c4_i32 : i32 to vector<25x128xi32>
      %87 = arith.cmpi eq, %14, %86 : vector<25x128xi32>
      %88 = vector.broadcast %58 : f32 to vector<25x128xf32>
      %89 = arith.select %87, %88, %85 : vector<25x128xi1>, vector<25x128xf32>
      %c5_i32 = arith.constant 5 : i32
      %90 = vector.broadcast %c5_i32 : i32 to vector<25x128xi32>
      %91 = arith.cmpi eq, %14, %90 : vector<25x128xi32>
      %92 = vector.broadcast %63 : f32 to vector<25x128xf32>
      %93 = arith.select %91, %92, %89 : vector<25x128xi1>, vector<25x128xf32>
      %c6_i32 = arith.constant 6 : i32
      %94 = vector.broadcast %c6_i32 : i32 to vector<25x128xi32>
      %95 = arith.cmpi eq, %14, %94 : vector<25x128xi32>
      %96 = vector.broadcast %68 : f32 to vector<25x128xf32>
      %97 = arith.select %95, %96, %93 : vector<25x128xi1>, vector<25x128xf32>
      %98 = vector.broadcast %arg7 : i32 to vector<25x128xi32>
      %99 = arith.cmpi eq, %13, %98 : vector<25x128xi32>
      %cst_25 = arith.constant 0.000000e+00 : f32
      %100 = vector.broadcast %cst_25 : f32 to vector<25x128xf32>
      %101 = arith.select %99, %97, %100 : vector<25x128xi1>, vector<25x128xf32>
      %102 = arith.addf %arg8, %101 : vector<25x128xf32>
      scf.yield %102 : vector<25x128xf32>
    }
    %c0 = arith.constant 0 : index
    %c0_2 = arith.constant 0 : index
    %c0_3 = arith.constant 0 : index
    %c0_4 = arith.constant 0 : index
    %19 = vector.load %arg6[%c0, %c0_2, %c0_3, %c0_4] : memref<1x1x25x128xf32, #tpu.memory_space<vmem>>, vector<1x1x25x128xf32>
    %20 = vector.shape_cast %19 : vector<1x1x25x128xf32> to vector<25x128xf32>
    %21 = vector.shape_cast %18 : vector<25x128xf32> to vector<1x1x25x128xf32>
    tpu.vector_store %arg6[%c0, %c0_2, %c0_3, %c0_4], %21 {strides = array<i32>} : memref<1x1x25x128xf32, #tpu.memory_space<vmem>>, vector<1x1x25x128xf32>,
    return
  }
  func.func @transform_0(%arg0: i32, %arg1: i32, %arg2: memref<2x25xi32, #tpu.memory_space<smem>>, %arg3: memref<2xi32, #tpu.memory_space<smem>>) -> (i32, i32, i32, i32) {
    %c1_i32 = arith.constant 1 : i32
    %c0_i32 = arith.constant 0 : i32
    %c0_i32_0 = arith.constant 0 : i32
    return %arg0, %c1_i32, %arg1, %c0_i32 : i32, i32, i32, i32
  }
  func.func @transform_1(%arg0: i32, %arg1: i32, %arg2: memref<2x25xi32, #tpu.memory_space<smem>>, %arg3: memref<2xi32, #tpu.memory_space<smem>>) -> (i32, i32, i32) {
    %c0_i32 = arith.constant 0 : i32
    %c0_i32_0 = arith.constant 0 : i32
    return %arg0, %arg1, %c0_i32 : i32, i32, i32
  }
  func.func @transform_2(%arg0: i32, %arg1: i32, %arg2: memref<2x25xi32, #tpu.memory_space<smem>>, %arg3: memref<2xi32, #tpu.memory_space<smem>>) -> (i32, i32, i32, i32) {
    %c0_i32 = arith.constant 0 : i32
    %c0_i32_0 = arith.constant 0 : i32
    %c0_i32_1 = arith.constant 0 : i32
    return %arg0, %arg1, %c0_i32, %c0_i32_0 : i32, i32, i32, i32
  }
}

module attributes {stable_mosaic.version = 11 : i64} {
  func.func @_dist_kernel(%arg0: i32, %arg1: i32, %arg2: i32, %arg3: memref<2x25xi32, #tpu.memory_space<smem>>, %arg4: memref<2xi32, #tpu.memory_space<smem>>, %arg5: memref<2x25xf32, #tpu.memory_space<smem>>, %arg6: memref<2x25xf32, #tpu.memory_space<smem>>, %arg7: memref<2x25xf32, #tpu.memory_space<smem>>, %arg8: memref<2x25xf32, #tpu.memory_space<smem>>, %arg9: memref<1x3x16x128xf32, #tpu.memory_space<vmem>>, %arg10: memref<1x16x128xi32, #tpu.memory_space<vmem>>, %arg11: memref<1x1x16x128xbf16, #tpu.memory_space<vmem>>, %arg12: memref<1x1x16x128xbf16, #tpu.memory_space<vmem>>, %arg13: memref<1x1x1x128xf32, #tpu.memory_space<vmem>>) attributes {dimension_semantics = [#tpu.dimension_semantics<parallel>, #tpu.dimension_semantics<parallel>, #tpu.dimension_semantics<parallel>], iteration_bounds = array<i64: 2, 1, 25>, scalar_prefetch = 2 : i64, scratch_operands = 0 : i64, tpu.core_type = #tpu.core_type<tc>, window_params = [{transform_indices = @transform_0, window_bounds = array<i64: 2, 25>}, {transform_indices = @transform_1, window_bounds = array<i64: 2, 25>}, {transform_indices = @transform_2, window_bounds = array<i64: 2, 25>}, {transform_indices = @transform_3, window_bounds = array<i64: 2, 25>}, {transform_indices = @transform_4, window_bounds = array<i64: 1, 3, 16, 128>}, {transform_indices = @transform_5, window_bounds = array<i64: 1, 16, 128>}, {transform_indices = @transform_6, window_bounds = array<i64: 1, 1, 16, 128>}, {transform_indices = @transform_7, window_bounds = array<i64: 1, 1, 16, 128>}, {transform_indices = @transform_8, window_bounds = array<i64: 1, 1, 1, 128>}]} {
    %0 = arith.index_cast %arg0 : i32 to index
    %1 = memref.load %arg4[%0] : memref<2xi32, #tpu.memory_space<smem>>
    %2 = arith.cmpi slt, %arg2, %1 : i32
    %3 = arith.extui %2 : i1 to i32
    %c0_i32 = arith.constant 0 : i32
    %4 = arith.cmpi ne, %3, %c0_i32 : i32
    scf.if %4 {
      %8 = arith.index_cast %arg0 : i32 to index
      %9 = arith.index_cast %arg2 : i32 to index
      %10 = memref.load %arg3[%8, %9] : memref<2x25xi32, #tpu.memory_space<smem>>
      %c0 = arith.constant 0 : index
      %c0_1 = arith.constant 0 : index
      %c0_2 = arith.constant 0 : index
      %11 = vector.load %arg10[%c0, %c0_1, %c0_2] : memref<1x16x128xi32, #tpu.memory_space<vmem>>, vector<1x16x128xi32>
      %12 = vector.shape_cast %11 : vector<1x16x128xi32> to vector<16x128xi32>
      %13 = vector.broadcast %10 : i32 to vector<16x128xi32>
      %14 = arith.cmpi eq, %12, %13 : vector<16x128xi32>
      %15 = arith.extui %14 : vector<16x128xi1> to vector<16x128xi32>
      %16 = arith.sitofp %15 : vector<16x128xi32> to vector<16x128xf32>
      %17 = arith.index_cast %arg0 : i32 to index
      %18 = arith.index_cast %arg2 : i32 to index
      %19 = memref.load %arg5[%17, %18] : memref<2x25xf32, #tpu.memory_space<smem>>
      %20 = arith.index_cast %arg0 : i32 to index
      %21 = arith.index_cast %arg2 : i32 to index
      %22 = memref.load %arg6[%20, %21] : memref<2x25xf32, #tpu.memory_space<smem>>
      %23 = arith.index_cast %arg0 : i32 to index
      %24 = arith.index_cast %arg2 : i32 to index
      %25 = memref.load %arg7[%23, %24] : memref<2x25xf32, #tpu.memory_space<smem>>
      %26 = arith.index_cast %arg0 : i32 to index
      %27 = arith.index_cast %arg2 : i32 to index
      %28 = memref.load %arg8[%26, %27] : memref<2x25xf32, #tpu.memory_space<smem>>
      %c0_3 = arith.constant 0 : index
      %c0_4 = arith.constant 0 : index
      %c0_5 = arith.constant 0 : index
      %c0_6 = arith.constant 0 : index
      %29 = vector.load %arg9[%c0_3, %c0_4, %c0_5, %c0_6] : memref<1x3x16x128xf32, #tpu.memory_space<vmem>>, vector<1x1x16x128xf32>
      %30 = vector.shape_cast %29 : vector<1x1x16x128xf32> to vector<16x128xf32>
      %c0_7 = arith.constant 0 : index
      %c1 = arith.constant 1 : index
      %c0_8 = arith.constant 0 : index
      %c0_9 = arith.constant 0 : index
      %31 = vector.load %arg9[%c0_7, %c1, %c0_8, %c0_9] : memref<1x3x16x128xf32, #tpu.memory_space<vmem>>, vector<1x1x16x128xf32>
      %32 = vector.shape_cast %31 : vector<1x1x16x128xf32> to vector<16x128xf32>
      %c0_10 = arith.constant 0 : index
      %c2 = arith.constant 2 : index
      %c0_11 = arith.constant 0 : index
      %c0_12 = arith.constant 0 : index
      %33 = vector.load %arg9[%c0_10, %c2, %c0_11, %c0_12] : memref<1x3x16x128xf32, #tpu.memory_space<vmem>>, vector<1x1x16x128xf32>
      %34 = vector.shape_cast %33 : vector<1x1x16x128xf32> to vector<16x128xf32>
      %35 = vector.broadcast %19 : f32 to vector<16x128xf32>
      %36 = arith.subf %30, %35 : vector<16x128xf32>
      %37 = arith.mulf %36, %36 : vector<16x128xf32>
      %38 = vector.broadcast %25 : f32 to vector<16x128xf32>
      %39 = arith.mulf %37, %38 : vector<16x128xf32>
      %40 = vector.broadcast %22 : f32 to vector<16x128xf32>
      %41 = arith.subf %32, %40 : vector<16x128xf32>
      %42 = arith.mulf %41, %41 : vector<16x128xf32>
      %43 = vector.broadcast %28 : f32 to vector<16x128xf32>
      %44 = arith.mulf %42, %43 : vector<16x128xf32>
      %45 = arith.addf %39, %44 : vector<16x128xf32>
      %cst = arith.constant 0.000000e+00 : f32
      %46 = vector.broadcast %cst : f32 to vector<16x128xf32>
      %47 = arith.subf %46, %45 : vector<16x128xf32>
      %48 = math.exp %47 : vector<16x128xf32>
      %cst_13 = arith.constant 2.000000e+00 : f32
      %49 = vector.broadcast %cst_13 : f32 to vector<16x128xf32>
      %50 = arith.mulf %49, %48 : vector<16x128xf32>
      %cst_14 = arith.constant 1.000000e+00 : f32
      %51 = vector.broadcast %cst_14 : f32 to vector<16x128xf32>
      %52 = arith.subf %50, %51 : vector<16x128xf32>
      %53 = arith.truncf %52 : vector<16x128xf32> to vector<16x128xbf16>
      %c0_15 = arith.constant 0 : index
      %c0_16 = arith.constant 0 : index
      %c0_17 = arith.constant 0 : index
      %c0_18 = arith.constant 0 : index
      %54 = vector.load %arg11[%c0_15, %c0_16, %c0_17, %c0_18] : memref<1x1x16x128xbf16, #tpu.memory_space<vmem>>, vector<1x1x16x128xbf16>
      %55 = vector.shape_cast %54 : vector<1x1x16x128xbf16> to vector<16x128xbf16>
      %56 = vector.shape_cast %53 : vector<16x128xbf16> to vector<1x1x16x128xbf16>
      tpu.vector_store %arg11[%c0_15, %c0_16, %c0_17, %c0_18], %56 {strides = array<i32>} : memref<1x1x16x128xbf16, #tpu.memory_space<vmem>>, vector<1x1x16x128xbf16>,
      %57 = arith.truncf %16 : vector<16x128xf32> to vector<16x128xbf16>
      %c0_19 = arith.constant 0 : index
      %c0_20 = arith.constant 0 : index
      %c0_21 = arith.constant 0 : index
      %c0_22 = arith.constant 0 : index
      %58 = vector.load %arg12[%c0_19, %c0_20, %c0_21, %c0_22] : memref<1x1x16x128xbf16, #tpu.memory_space<vmem>>, vector<1x1x16x128xbf16>
      %59 = vector.shape_cast %58 : vector<1x1x16x128xbf16> to vector<16x128xbf16>
      %60 = vector.shape_cast %57 : vector<16x128xbf16> to vector<1x1x16x128xbf16>
      tpu.vector_store %arg12[%c0_19, %c0_20, %c0_21, %c0_22], %60 {strides = array<i32>} : memref<1x1x16x128xbf16, #tpu.memory_space<vmem>>, vector<1x1x16x128xbf16>,
      %61 = arith.subf %34, %48 : vector<16x128xf32>
      %62 = arith.mulf %61, %61 : vector<16x128xf32>
      %63 = arith.mulf %16, %62 : vector<16x128xf32>
      %64 = vector.shape_cast %63 : vector<16x128xf32> to vector<1x16x128xf32>
      %cst_23 = arith.constant dense<0.000000e+00> : vector<1xf32>
      %65 = vector.multi_reduction <add>, %64, %cst_23 [1, 2] : vector<1x16x128xf32> to vector<1xf32>
      %66 = vector.shape_cast %65 : vector<1xf32> to vector<1x1x1xf32>
      %67 = vector.extract %66[0, 0, 0] : f32 from vector<1x1x1xf32>
      %cst_24 = arith.constant 5.000000e-01 : f32
      %68 = vector.broadcast %cst_24 : f32 to vector<16x128xf32>
      %69 = arith.cmpf ogt, %48, %68 : vector<16x128xf32>
      %70 = arith.extui %69 : vector<16x128xi1> to vector<16x128xi32>
      %71 = arith.sitofp %70 : vector<16x128xi32> to vector<16x128xf32>
      %72 = arith.mulf %71, %16 : vector<16x128xf32>
      %73 = vector.shape_cast %72 : vector<16x128xf32> to vector<1x16x128xf32>
      %cst_25 = arith.constant dense<0.000000e+00> : vector<1xf32>
      %74 = vector.multi_reduction <add>, %73, %cst_25 [1, 2] : vector<1x16x128xf32> to vector<1xf32>
      %75 = vector.shape_cast %74 : vector<1xf32> to vector<1x1x1xf32>
      %76 = vector.extract %75[0, 0, 0] : f32 from vector<1x1x1xf32>
      %77 = vector.shape_cast %71 : vector<16x128xf32> to vector<1x16x128xf32>
      %cst_26 = arith.constant dense<0.000000e+00> : vector<1xf32>
      %78 = vector.multi_reduction <add>, %77, %cst_26 [1, 2] : vector<1x16x128xf32> to vector<1xf32>
      %79 = vector.shape_cast %78 : vector<1xf32> to vector<1x1x1xf32>
      %80 = vector.extract %79[0, 0, 0] : f32 from vector<1x1x1xf32>
      %81 = tpu.iota {dimensions = array<i32: 3>} : vector<1x1x1x128xi32>
      %cst_27 = arith.constant 0.000000e+00 : f32
      %82 = vector.broadcast %cst_27 : f32 to vector<1x1x1x128xf32>
      %c0_i32_28 = arith.constant 0 : i32
      %83 = vector.broadcast %c0_i32_28 : i32 to vector<1x1x1x128xi32>
      %84 = arith.cmpi eq, %81, %83 : vector<1x1x1x128xi32>
      %85 = vector.broadcast %67 : f32 to vector<1x1x1x128xf32>
      %86 = arith.select %84, %85, %82 : vector<1x1x1x128xi1>, vector<1x1x1x128xf32>
      %c1_i32 = arith.constant 1 : i32
      %87 = vector.broadcast %c1_i32 : i32 to vector<1x1x1x128xi32>
      %88 = arith.cmpi eq, %81, %87 : vector<1x1x1x128xi32>
      %89 = vector.broadcast %76 : f32 to vector<1x1x1x128xf32>
      %90 = arith.select %88, %89, %86 : vector<1x1x1x128xi1>, vector<1x1x1x128xf32>
      %c2_i32 = arith.constant 2 : i32
      %91 = vector.broadcast %c2_i32 : i32 to vector<1x1x1x128xi32>
      %92 = arith.cmpi eq, %81, %91 : vector<1x1x1x128xi32>
      %93 = vector.broadcast %80 : f32 to vector<1x1x1x128xf32>
      %94 = arith.select %92, %93, %90 : vector<1x1x1x128xi1>, vector<1x1x1x128xf32>
      %c0_29 = arith.constant 0 : index
      %c0_30 = arith.constant 0 : index
      %c0_31 = arith.constant 0 : index
      %c0_32 = arith.constant 0 : index
      %95 = vector.load %arg13[%c0_29, %c0_30, %c0_31, %c0_32] : memref<1x1x1x128xf32, #tpu.memory_space<vmem>>, vector<1x1x1x128xf32>
      tpu.vector_store %arg13[%c0_29, %c0_30, %c0_31, %c0_32], %94 {strides = array<i32>} : memref<1x1x1x128xf32, #tpu.memory_space<vmem>>, vector<1x1x1x128xf32>,
    } else {
    }
    %true = arith.constant true
    %5 = arith.xori %2, %true : i1
    %6 = arith.extui %5 : i1 to i32
    %c0_i32_0 = arith.constant 0 : i32
    %7 = arith.cmpi ne, %6, %c0_i32_0 : i32
    scf.if %7 {
      %cst = arith.constant 0.000000e+00 : bf16
      %8 = vector.broadcast %cst : bf16 to vector<1x1x16x128xbf16>
      %c0 = arith.constant 0 : index
      %c0_1 = arith.constant 0 : index
      %c0_2 = arith.constant 0 : index
      %c0_3 = arith.constant 0 : index
      %9 = vector.load %arg11[%c0, %c0_1, %c0_2, %c0_3] : memref<1x1x16x128xbf16, #tpu.memory_space<vmem>>, vector<1x1x16x128xbf16>
      tpu.vector_store %arg11[%c0, %c0_1, %c0_2, %c0_3], %8 {strides = array<i32>} : memref<1x1x16x128xbf16, #tpu.memory_space<vmem>>, vector<1x1x16x128xbf16>,
      %cst_4 = arith.constant 0.000000e+00 : bf16
      %10 = vector.broadcast %cst_4 : bf16 to vector<1x1x16x128xbf16>
      %c0_5 = arith.constant 0 : index
      %c0_6 = arith.constant 0 : index
      %c0_7 = arith.constant 0 : index
      %c0_8 = arith.constant 0 : index
      %11 = vector.load %arg12[%c0_5, %c0_6, %c0_7, %c0_8] : memref<1x1x16x128xbf16, #tpu.memory_space<vmem>>, vector<1x1x16x128xbf16>
      tpu.vector_store %arg12[%c0_5, %c0_6, %c0_7, %c0_8], %10 {strides = array<i32>} : memref<1x1x16x128xbf16, #tpu.memory_space<vmem>>, vector<1x1x16x128xbf16>,
      %cst_9 = arith.constant 0.000000e+00 : f32
      %12 = vector.broadcast %cst_9 : f32 to vector<1x1x1x128xf32>
      %c0_10 = arith.constant 0 : index
      %c0_11 = arith.constant 0 : index
      %c0_12 = arith.constant 0 : index
      %c0_13 = arith.constant 0 : index
      %13 = vector.load %arg13[%c0_10, %c0_11, %c0_12, %c0_13] : memref<1x1x1x128xf32, #tpu.memory_space<vmem>>, vector<1x1x1x128xf32>
      tpu.vector_store %arg13[%c0_10, %c0_11, %c0_12, %c0_13], %12 {strides = array<i32>} : memref<1x1x1x128xf32, #tpu.memory_space<vmem>>, vector<1x1x1x128xf32>,
    } else {
    }
    return
  }
  func.func @transform_0(%arg0: i32, %arg1: i32, %arg2: i32, %arg3: memref<2x25xi32, #tpu.memory_space<smem>>, %arg4: memref<2xi32, #tpu.memory_space<smem>>) -> (i32, i32) {
    %c0_i32 = arith.constant 0 : i32
    %c0_i32_0 = arith.constant 0 : i32
    %c0_i32_1 = arith.constant 0 : i32
    return %c0_i32, %c0_i32_0 : i32, i32
  }
  func.func @transform_1(%arg0: i32, %arg1: i32, %arg2: i32, %arg3: memref<2x25xi32, #tpu.memory_space<smem>>, %arg4: memref<2xi32, #tpu.memory_space<smem>>) -> (i32, i32) {
    %c0_i32 = arith.constant 0 : i32
    %c0_i32_0 = arith.constant 0 : i32
    %c0_i32_1 = arith.constant 0 : i32
    return %c0_i32, %c0_i32_0 : i32, i32
  }
  func.func @transform_2(%arg0: i32, %arg1: i32, %arg2: i32, %arg3: memref<2x25xi32, #tpu.memory_space<smem>>, %arg4: memref<2xi32, #tpu.memory_space<smem>>) -> (i32, i32) {
    %c0_i32 = arith.constant 0 : i32
    %c0_i32_0 = arith.constant 0 : i32
    %c0_i32_1 = arith.constant 0 : i32
    return %c0_i32, %c0_i32_0 : i32, i32
  }
  func.func @transform_3(%arg0: i32, %arg1: i32, %arg2: i32, %arg3: memref<2x25xi32, #tpu.memory_space<smem>>, %arg4: memref<2xi32, #tpu.memory_space<smem>>) -> (i32, i32) {
    %c0_i32 = arith.constant 0 : i32
    %c0_i32_0 = arith.constant 0 : i32
    %c0_i32_1 = arith.constant 0 : i32
    return %c0_i32, %c0_i32_0 : i32, i32
  }
  func.func @transform_4(%arg0: i32, %arg1: i32, %arg2: i32, %arg3: memref<2x25xi32, #tpu.memory_space<smem>>, %arg4: memref<2xi32, #tpu.memory_space<smem>>) -> (i32, i32, i32, i32) {
    %c0_i32 = arith.constant 0 : i32
    %c0_i32_0 = arith.constant 0 : i32
    %c0_i32_1 = arith.constant 0 : i32
    return %arg0, %c0_i32, %arg1, %c0_i32_0 : i32, i32, i32, i32
  }
  func.func @transform_5(%arg0: i32, %arg1: i32, %arg2: i32, %arg3: memref<2x25xi32, #tpu.memory_space<smem>>, %arg4: memref<2xi32, #tpu.memory_space<smem>>) -> (i32, i32, i32) {
    %c0_i32 = arith.constant 0 : i32
    %c0_i32_0 = arith.constant 0 : i32
    return %arg0, %arg1, %c0_i32 : i32, i32, i32
  }
  func.func @transform_6(%arg0: i32, %arg1: i32, %arg2: i32, %arg3: memref<2x25xi32, #tpu.memory_space<smem>>, %arg4: memref<2xi32, #tpu.memory_space<smem>>) -> (i32, i32, i32, i32) {
    %c0_i32 = arith.constant 0 : i32
    %c0_i32_0 = arith.constant 0 : i32
    return %arg0, %arg2, %arg1, %c0_i32 : i32, i32, i32, i32
  }
  func.func @transform_7(%arg0: i32, %arg1: i32, %arg2: i32, %arg3: memref<2x25xi32, #tpu.memory_space<smem>>, %arg4: memref<2xi32, #tpu.memory_space<smem>>) -> (i32, i32, i32, i32) {
    %c0_i32 = arith.constant 0 : i32
    %c0_i32_0 = arith.constant 0 : i32
    return %arg0, %arg2, %arg1, %c0_i32 : i32, i32, i32, i32
  }
  func.func @transform_8(%arg0: i32, %arg1: i32, %arg2: i32, %arg3: memref<2x25xi32, #tpu.memory_space<smem>>, %arg4: memref<2xi32, #tpu.memory_space<smem>>) -> (i32, i32, i32, i32) {
    %c1_i32 = arith.constant 1 : i32
    %0 = arith.muli %arg2, %c1_i32 : i32
    %1 = arith.addi %0, %arg1 : i32
    %c0_i32 = arith.constant 0 : i32
    %c0_i32_0 = arith.constant 0 : i32
    %c0_i32_1 = arith.constant 0 : i32
    return %arg0, %1, %c0_i32, %c0_i32_0 : i32, i32, i32, i32
  }
}

</mosaic_0001>

<llo_original>
// kernel: _loss_impl.3
$region0: #{_loss_impl.3}
  #allocation0 [shape = 'u32[]', space=smem, size = 0x4, offset = 0x4, fixed_abs, tag = 'smem constant byte address 0x4 - core index']
  #allocation1 [shape = 'u32[144,128]{1,0:T(1,128)}', space=vmem, size = 0x12000, scoped, tag = 'internal scratch']
  %s0 = inlined_call_operand.vmem [shape: f32[2,10,16,128], index: 0, kind: input, shape index: {}]
  %s1 = inlined_call_operand.vmem [shape: f32[2,3,16,128], index: 1, kind: input, shape index: {}]
  %s2 = inlined_call_operand.vmem [shape: s32[2,16,128], index: 2, kind: input, shape index: {}]
  %s3 = inlined_call_operand.vmem [shape: s32[2,16,128], index: 3, kind: input, shape index: {}]
  %s4 = inlined_call_operand.vmem [shape: f32[2,3,16,128], index: 4, kind: output, shape index: {0}]
  %s5 = inlined_call_operand.vmem [shape: f32[2,1,1,128], index: 5, kind: output, shape index: {1}]
  %6 = xla_tuple %s4, %s5
  %s7 = sld [smem:[#allocation0]]
  $region57: #{_loss_impl.3} parent=0
    _
  %s9 = ssub.s32 1, %s7
  %s10 = scalar_select 0, %s9, %s7
  loop: start=0, step=1, limit=4
  $region2: #{_loss_impl.3} parent=0 // loop_pre_header
    _
  $region3: #{_loss_impl.3} parent=0 // loop_header
    %s12 = sphi 0, %s16
    %p13 = scmp.ge.s32.totalorder %s12, 4
    %s19 = sphi 0, %s31
    %s20 = sphi 0, %s27
    %s21 = sphi 0, %s19
    %s22 = sphi 0, %s20
    %s23 = sphi 0, %s21
    %s24 = sphi 0, %s22
    %s36 = sphi 0, %s38
    %s39 = sphi 0, %s36
    %s40 = sphi 0, %s39
    %s56 = sphi 0, %s40
    %s64 = sphi 0, %s66
    %s67 = sphi 0, %s64
    %s68 = sphi 0, %s67
    %s84 = sphi 0, %s68
    %s92 = sphi 0, %s94
    %s95 = sphi 0, %s92
    %s96 = sphi 0, %s95
    %s112 = sphi 0, %s96
    %s120 = sphi 0, %s122
    %s123 = sphi 0, %s120
    %s124 = sphi 0, %s123
    %s140 = sphi 0, %s124
    %s148 = sphi 0, %s150
    %s151 = sphi 0, %s148
    %s152 = sphi 0, %s151
    %s168 = sphi 0, %s152
    %s176 = sphi 0, %s178
    %s179 = sphi 0, %s176
    %s180 = sphi 0, %s179
    %s196 = sphi 0, %s180
  $region4: #{_loss_impl.3} parent=0 // loop_header_branch
    %15 = sbr.rel (%p13) target = $region8
  $region5: #{_loss_impl.3} parent=0 // loop_body
    %s17 = ssub.s32 %s12, 1
    %s18 = ssub.s32 %s12, 2
    %s25 = sadd.s32 1, %s20
    %p26 = scmp.ge.s32.totalorder %s25, 1
    %s27 = scalar_select %p26, 0, %s25
    %s28 = sadd.s32 1, %s19
    %s29 = scalar_select %p26, %s28, %s19
    %p30 = scmp.ge.s32.totalorder %s29, 2
    %s31 = scalar_select %p30, 0, %s29
    %s32 = ssub.s32 %s19, %s31
    %s33 = ssub.s32 %s20, %s27
    %s34 = sor.u32 %s32, %s33
    %p35 = scmp.eq.s32.totalorder %s34, 0
    %s37 = sadd.s32 %s36, 1
    %s38 = scalar_select %p35, %s36, %s37
    %p41 = pneg %p35
    %p42 = scmp.eq.s32.totalorder %s12, 1
    %p43 = por %p41, %p42
    %p44 = scmp.ne.s32.totalorder %s36, %s39
    %p45 = scmp.eq.s32.totalorder %s12, 0
    %p46 = por %p44, %p45
    %p47 = scmp.ne.s32.totalorder %s36, %s39
    %p48 = scmp.eq.s32.totalorder %s17, 1
    %p49 = por %p47, %p48
    %p50 = scmp.ne.s32.totalorder %s39, %s40
    %p51 = scmp.eq.s32.totalorder %s17, 0
    %p52 = por %p50, %p51
    %p53 = scmp.ne.s32.totalorder %s39, %s40
    %p54 = scmp.eq.s32.totalorder %s18, 1
    %p55 = por %p53, %p54
    %p57 = scmp.ne.s32.totalorder %s40, %s56
    %p58 = scmp.eq.s32.totalorder %s18, 0
    %p59 = por %p57, %p58
    %s60 = ssub.s32 %s19, %s31
    %s61 = ssub.s32 %s20, %s27
    %s62 = sor.u32 %s60, %s61
    %p63 = scmp.eq.s32.totalorder %s62, 0
    %s65 = sadd.s32 %s64, 1
    %s66 = scalar_select %p63, %s64, %s65
    %p69 = pneg %p63
    %p70 = scmp.eq.s32.totalorder %s12, 1
    %p71 = por %p69, %p70
    %p72 = scmp.ne.s32.totalorder %s64, %s67
    %p73 = scmp.eq.s32.totalorder %s12, 0
    %p74 = por %p72, %p73
    %p75 = scmp.ne.s32.totalorder %s64, %s67
    %p76 = scmp.eq.s32.totalorder %s17, 1
    %p77 = por %p75, %p76
    %p78 = scmp.ne.s32.totalorder %s67, %s68
    %p79 = scmp.eq.s32.totalorder %s17, 0
    %p80 = por %p78, %p79
    %p81 = scmp.ne.s32.totalorder %s67, %s68
    %p82 = scmp.eq.s32.totalorder %s18, 1
    %p83 = por %p81, %p82
    %p85 = scmp.ne.s32.totalorder %s68, %s84
    %p86 = scmp.eq.s32.totalorder %s18, 0
    %p87 = por %p85, %p86
    %s88 = ssub.s32 %s19, %s31
    %s89 = ssub.s32 %s20, %s27
    %s90 = sor.u32 %s88, %s89
    %p91 = scmp.eq.s32.totalorder %s90, 0
    %s93 = sadd.s32 %s92, 1
    %s94 = scalar_select %p91, %s92, %s93
    %p97 = pneg %p91
    %p98 = scmp.eq.s32.totalorder %s12, 1
    %p99 = por %p97, %p98
    %p100 = scmp.ne.s32.totalorder %s92, %s95
    %p101 = scmp.eq.s32.totalorder %s12, 0
    %p102 = por %p100, %p101
    %p103 = scmp.ne.s32.totalorder %s92, %s95
    %p104 = scmp.eq.s32.totalorder %s17, 1
    %p105 = por %p103, %p104
    %p106 = scmp.ne.s32.totalorder %s95, %s96
    %p107 = scmp.eq.s32.totalorder %s17, 0
    %p108 = por %p106, %p107
    %p109 = scmp.ne.s32.totalorder %s95, %s96
    %p110 = scmp.eq.s32.totalorder %s18, 1
    %p111 = por %p109, %p110
    %p113 = scmp.ne.s32.totalorder %s96, %s112
    %p114 = scmp.eq.s32.totalorder %s18, 0
    %p115 = por %p113, %p114
    %s116 = ssub.s32 %s19, %s31
    %s117 = ssub.s32 %s20, %s27
    %s118 = sor.u32 %s116, %s117
    %p119 = scmp.eq.s32.totalorder %s118, 0
    %s121 = sadd.s32 %s120, 1
    %s122 = scalar_select %p119, %s120, %s121
    %p125 = pneg %p119
    %p126 = scmp.eq.s32.totalorder %s12, 1
    %p127 = por %p125, %p126
    %p128 = scmp.ne.s32.totalorder %s120, %s123
    %p129 = scmp.eq.s32.totalorder %s12, 0
    %p130 = por %p128, %p129
    %p131 = scmp.ne.s32.totalorder %s120, %s123
    %p132 = scmp.eq.s32.totalorder %s17, 1
    %p133 = por %p131, %p132
    %p134 = scmp.ne.s32.totalorder %s123, %s124
    %p135 = scmp.eq.s32.totalorder %s17, 0
    %p136 = por %p134, %p135
    %p137 = scmp.ne.s32.totalorder %s123, %s124
    %p138 = scmp.eq.s32.totalorder %s18, 1
    %p139 = por %p137, %p138
    %p141 = scmp.ne.s32.totalorder %s124, %s140
    %p142 = scmp.eq.s32.totalorder %s18, 0
    %p143 = por %p141, %p142
    %s144 = ssub.s32 %s19, %s31
    %s145 = ssub.s32 %s20, %s27
    %s146 = sor.u32 %s144, %s145
    %p147 = scmp.eq.s32.totalorder %s146, 0
    %s149 = sadd.s32 %s148, 1
    %s150 = scalar_select %p147, %s148, %s149
    %p153 = pneg %p147
    %p154 = scmp.eq.s32.totalorder %s12, 1
    %p155 = por %p153, %p154
    %p156 = scmp.ne.s32.totalorder %s148, %s151
    %p157 = scmp.eq.s32.totalorder %s12, 0
    %p158 = por %p156, %p157
    %p159 = scmp.ne.s32.totalorder %s148, %s151
    %p160 = scmp.eq.s32.totalorder %s17, 1
    %p161 = por %p159, %p160
    %p162 = scmp.ne.s32.totalorder %s151, %s152
    %p163 = scmp.eq.s32.totalorder %s17, 0
    %p164 = por %p162, %p163
    %p165 = scmp.ne.s32.totalorder %s151, %s152
    %p166 = scmp.eq.s32.totalorder %s18, 1
    %p167 = por %p165, %p166
    %p169 = scmp.ne.s32.totalorder %s152, %s168
    %p170 = scmp.eq.s32.totalorder %s18, 0
    %p171 = por %p169, %p170
    %s172 = ssub.s32 %s19, %s31
    %s173 = ssub.s32 %s20, %s27
    %s174 = sor.u32 %s172, %s173
    %p175 = scmp.eq.s32.totalorder %s174, 0
    %s177 = sadd.s32 %s176, 1
    %s178 = scalar_select %p175, %s176, %s177
    %p181 = pneg %p175
    %p182 = scmp.eq.s32.totalorder %s12, 1
    %p183 = por %p181, %p182
    %p184 = scmp.ne.s32.totalorder %s176, %s179
    %p185 = scmp.eq.s32.totalorder %s12, 0
    %p186 = por %p184, %p185
    %p187 = scmp.ne.s32.totalorder %s176, %s179
    %p188 = scmp.eq.s32.totalorder %s17, 1
    %p189 = por %p187, %p188
    %p190 = scmp.ne.s32.totalorder %s179, %s180
    %p191 = scmp.eq.s32.totalorder %s17, 0
    %p192 = por %p190, %p191
    %p193 = scmp.ne.s32.totalorder %s179, %s180
    %p194 = scmp.eq.s32.totalorder %s18, 1
    %p195 = por %p193, %p194
    %p197 = scmp.ne.s32.totalorder %s180, %s196
    %p198 = scmp.eq.s32.totalorder %s18, 0
    %p199 = por %p197, %p198
    %p200 = scmp.le.s32.totalorder 1, %s12
    %p201 = scmp.lt.s32.totalorder %s12, 3
    %p202 = pnand %p200, %p201
    %p203 = pneg %p202
    // Predicated region
    $region9: #{_loss_impl.3} parent=5 // pred_check
      _
    $region10: #{_loss_impl.3} parent=5 // pred_check_branch
      %205 = sbr.rel (%p202) target = $region12
    $region11: #{_loss_impl.3} parent=5 // pred_region
      %s206 = ssub.s32 %s12, 1
    $region12: #{_loss_impl.3} parent=5 // pred_fallthru
      _
    %p207 = scmp.lt.s32.totalorder %s12, 2
    // Predicated region
    $region13: #{_loss_impl.3} parent=5 // pred_check
      %p208 = pneg %p207
    $region14: #{_loss_impl.3} parent=5 // pred_check_branch
      %210 = sbr.rel (%p208) target = $region16
    $region15: #{_loss_impl.3} parent=5 // pred_region
      // Predicated region
      $region17: #{_loss_impl.3} parent=15 // pred_check
        %p211 = pneg %p46
      $region18: #{_loss_impl.3} parent=15 // pred_check_branch
        %213 = sbr.rel (%p211) target = $region20
      $region19: #{_loss_impl.3} parent=15 // pred_region
        %s214 = smul.u32 2, %s20
        %p215 = scmp.lt.s32.totalorder %s19, 1
        %s216 = scalar_select %p215, %s19, 1
        %p217 = scmp.lt.s32.totalorder %s214, 1
        %s218 = scalar_select %p217, %s214, 1
        %s219 = smul.addr %s216, 20
        %s220 = sadd.s32 %s218, %s219
        %s221 = smul.addr %s220, 8
        %s222 = scalar_lea.vmem %s0, %s221
        %s223 = smul.u32 2, %s20
      $region20: #{_loss_impl.3} parent=15 // pred_fallthru
        _
      // Predicated region
      $region21: #{_loss_impl.3} parent=15 // pred_check
        %p224 = pneg %p74
      $region22: #{_loss_impl.3} parent=15 // pred_check_branch
        %226 = sbr.rel (%p224) target = $region24
      $region23: #{_loss_impl.3} parent=15 // pred_region
        %s227 = smul.u32 2, %s20
        %p228 = scmp.lt.s32.totalorder %s19, 1
        %s229 = scalar_select %p228, %s19, 1
        %p230 = scmp.lt.s32.totalorder %s227, 1
        %s231 = scalar_select %p230, %s227, 1
        %s232 = smul.addr %s229, 6
        %s233 = sadd.s32 %s231, %s232
        %s234 = smul.addr %s233, 8
        %s235 = scalar_lea.vmem %s1, %s234
        %s236 = smul.u32 2, %s20
      $region24: #{_loss_impl.3} parent=15 // pred_fallthru
        _
      // Predicated region
      $region25: #{_loss_impl.3} parent=15 // pred_check
        %p237 = pneg %p102
      $region26: #{_loss_impl.3} parent=15 // pred_check_branch
        %239 = sbr.rel (%p237) target = $region28
      $region27: #{_loss_impl.3} parent=15 // pred_region
        %s240 = smul.u32 2, %s20
        %p241 = scmp.lt.s32.totalorder %s19, 1
        %s242 = scalar_select %p241, %s19, 1
        %p243 = scmp.lt.s32.totalorder %s240, 1
        %s244 = scalar_select %p243, %s240, 1
        %s245 = smul.addr %s242, 2
        %s246 = sadd.s32 %s244, %s245
        %s247 = smul.addr %s246, 8
        %s248 = scalar_lea.vmem %s2, %s247
        %s249 = smul.u32 2, %s20
      $region28: #{_loss_impl.3} parent=15 // pred_fallthru
        _
      // Predicated region
      $region29: #{_loss_impl.3} parent=15 // pred_check
        %p250 = pneg %p130
      $region30: #{_loss_impl.3} parent=15 // pred_check_branch
        %252 = sbr.rel (%p250) target = $region32
      $region31: #{_loss_impl.3} parent=15 // pred_region
        %s253 = smul.u32 2, %s20
        %p254 = scmp.lt.s32.totalorder %s19, 1
        %s255 = scalar_select %p254, %s19, 1
        %p256 = scmp.lt.s32.totalorder %s253, 1
        %s257 = scalar_select %p256, %s253, 1
        %s258 = smul.addr %s255, 2
        %s259 = sadd.s32 %s257, %s258
        %s260 = smul.addr %s259, 8
        %s261 = scalar_lea.vmem %s3, %s260
        %s262 = smul.u32 2, %s20
      $region32: #{_loss_impl.3} parent=15 // pred_fallthru
        _
    $region16: #{_loss_impl.3} parent=5 // pred_fallthru
      _
    %p263 = scmp.le.s32.totalorder 1, %s12
    %p264 = scmp.lt.s32.totalorder %s12, 3
    %p265 = pnand %p263, %p264
    %p266 = pneg %p265
    // Predicated region
    $region33: #{_loss_impl.3} parent=5 // pred_check
      _
    $region34: #{_loss_impl.3} parent=5 // pred_check_branch
      %268 = sbr.rel (%p265) target = $region36
    $region35: #{_loss_impl.3} parent=5 // pred_region
      %s269 = ssub.s32 %s12, 1
      %s270 = smul.u32 2, %s22
      %p271 = scmp.lt.s32.totalorder %s21, 1
      %s272 = scalar_select %p271, %s21, 1
      %p273 = scmp.lt.s32.totalorder %s270, 1
      %s274 = scalar_select %p273, %s270, 1
      %s275 = smul.addr %s272, 20
      %s276 = sadd.s32 %s274, %s275
      %s277 = smul.addr %s276, 8
      %s278 = scalar_lea.vmem %s0, %s277
      %p279 = pneg %p52
      %p280 = pneg %p49
      %s281 = smul.u32 2, %s22
      %p282 = scmp.lt.s32.totalorder %s21, 1
      %s283 = scalar_select %p282, %s21, 1
      %p284 = scmp.lt.s32.totalorder %s281, 1
      %s285 = scalar_select %p284, %s281, 1
      %s286 = smul.addr %s283, 6
      %s287 = sadd.s32 %s285, %s286
      %s288 = smul.addr %s287, 8
      %s289 = scalar_lea.vmem %s1, %s288
      %p290 = pneg %p80
      %p291 = pneg %p77
      %s292 = smul.u32 2, %s22
      %p293 = scmp.lt.s32.totalorder %s21, 1
      %s294 = scalar_select %p293, %s21, 1
      %p295 = scmp.lt.s32.totalorder %s292, 1
      %s296 = scalar_select %p295, %s292, 1
      %s297 = smul.addr %s294, 2
      %s298 = sadd.s32 %s296, %s297
      %s299 = smul.addr %s298, 8
      %s300 = scalar_lea.vmem %s2, %s299
      %p301 = pneg %p108
      %p302 = pneg %p105
      %s303 = smul.u32 2, %s22
      %p304 = scmp.lt.s32.totalorder %s21, 1
      %s305 = scalar_select %p304, %s21, 1
      %p306 = scmp.lt.s32.totalorder %s303, 1
      %s307 = scalar_select %p306, %s303, 1
      %s308 = smul.addr %s305, 2
      %s309 = sadd.s32 %s307, %s308
      %s310 = smul.addr %s309, 8
      %s311 = scalar_lea.vmem %s3, %s310
      %p312 = pneg %p136
      %p313 = pneg %p133
      %p314 = pneg %p164
      %p315 = pneg %p161
      %s316 = smul.u32 2, %s22
      %p317 = scmp.lt.s32.totalorder %s21, 1
      %s318 = scalar_select %p317, %s21, 1
      %p319 = scmp.lt.s32.totalorder %s316, 1
      %s320 = scalar_select %p319, %s316, 1
      %s321 = smul.addr %s318, 6
      %s322 = sadd.s32 %s320, %s321
      %s323 = smul.addr %s322, 8
      %s324 = scalar_lea.vmem %s4, %s323
      %p325 = pneg %p192
      %p326 = pneg %p189
      %p327 = scmp.lt.s32.totalorder %s21, 1
      %s328 = scalar_select %p327, %s21, 1
      %p329 = scmp.lt.s32.totalorder %s22, 0
      %s330 = scalar_select %p329, %s22, 0
      %s331 = sadd.s32 %s330, %s328
      %s332 = scalar_lea.vmem %s5, %s331
      %s333 = smul.u32 2, %s22
      %p334 = scmp.lt.s32.totalorder %s21, 1
      %s335 = scalar_select %p334, %s21, 1
      %p336 = scmp.lt.s32.totalorder %s333, 1
      %s337 = scalar_select %p336, %s333, 1
      %s338 = smul.addr %s335, 20
      %s339 = sadd.s32 %s337, %s338
      %s340 = smul.addr %s339, 8
      %s341 = scalar_lea.vmem %s0, %s340
      %s342 = smul.u32 2, %s22
      %s343 = smul.u32 2, %s22
      %p344 = scmp.lt.s32.totalorder %s21, 1
      %s345 = scalar_select %p344, %s21, 1
      %p346 = scmp.lt.s32.totalorder %s343, 1
      %s347 = scalar_select %p346, %s343, 1
      %s348 = smul.addr %s345, 6
      %s349 = sadd.s32 %s347, %s348
      %s350 = smul.addr %s349, 8
      %s351 = scalar_lea.vmem %s1, %s350
      %s352 = smul.u32 2, %s22
      %s353 = smul.u32 2, %s22
      %p354 = scmp.lt.s32.totalorder %s21, 1
      %s355 = scalar_select %p354, %s21, 1
      %p356 = scmp.lt.s32.totalorder %s353, 1
      %s357 = scalar_select %p356, %s353, 1
      %s358 = smul.addr %s355, 2
      %s359 = sadd.s32 %s357, %s358
      %s360 = smul.addr %s359, 8
      %s361 = scalar_lea.vmem %s2, %s360
      %s362 = smul.u32 2, %s22
      %s363 = smul.u32 2, %s22
      %p364 = scmp.lt.s32.totalorder %s21, 1
      %s365 = scalar_select %p364, %s21, 1
      %p366 = scmp.lt.s32.totalorder %s363, 1
      %s367 = scalar_select %p366, %s363, 1
      %s368 = smul.addr %s365, 2
      %s369 = sadd.s32 %s367, %s368
      %s370 = smul.addr %s369, 8
      %s371 = scalar_lea.vmem %s3, %s370
      %s372 = smul.u32 2, %s22
      %s373 = smul.u32 2, %s22
      %p374 = scmp.lt.s32.totalorder %s21, 1
      %s375 = scalar_select %p374, %s21, 1
      %p376 = scmp.lt.s32.totalorder %s373, 1
      %s377 = scalar_select %p376, %s373, 1
      %s378 = smul.addr %s375, 6
      %s379 = sadd.s32 %s377, %s378
      %s380 = smul.addr %s379, 8
      %s381 = scalar_lea.vmem %s4, %s380
      %s382 = smul.u32 2, %s22
      %p383 = scmp.lt.s32.totalorder %s21, 1
      %s384 = scalar_select %p383, %s21, 1
      %p385 = scmp.lt.s32.totalorder %s22, 0
      %s386 = scalar_select %p385, %s22, 0
      %s387 = sadd.s32 %s386, %s384
      %s388 = scalar_lea.vmem %s5, %s387
      %v389 = vld [vmem:[%s341] sm:$0xff]
      %v390 = vld [vmem:[%s341 + $0x8] sm:$0xff]
      %v391 = vld [vmem:[%s341 + $0x10] sm:$0xff]
      %v392 = vld [vmem:[%s341 + $0x18] sm:$0xff]
      %s393 = scalar_lea.vmem %s341, 64
      %v394 = vld [vmem:[%s393] sm:$0xff]
      %v395 = vld [vmem:[%s393 + $0x8] sm:$0xff]
      %s396 = scalar_lea.vmem %s341, 80
      %v397 = vld [vmem:[%s396] sm:$0xff]
      %v398 = vld [vmem:[%s396 + $0x8] sm:$0xff]
      %s399 = scalar_lea.vmem %s341, 96
      %v400 = vld [vmem:[%s399] sm:$0xff]
      %v401 = vld [vmem:[%s399 + $0x8] sm:$0xff]
      %s402 = scalar_lea.vmem %s341, 112
      %v403 = vld [vmem:[%s402] sm:$0xff]
      %v404 = vld [vmem:[%s402 + $0x8] sm:$0xff]
      %v405 = vld [vmem:[%s402 + $0x10] sm:$0xff]
      %v406 = vld [vmem:[%s402 + $0x18] sm:$0xff]
      %v407 = vld [vmem:[%s402 + $0x20] sm:$0xff]
      %v408 = vld [vmem:[%s402 + $0x28] sm:$0xff]
      %v409 = vlaneseq
      %v410 = vand.u32 %v409, 127
      %v411 = vcvt.s32.f32 %v410
      %v412 = vlaneseq
      %v413 = vshrl.u32 %v412, 7
      %v414 = vadd.s32 %v413, 8
      %s415 = smul.u32 %s22, 16
      %v416 = vstv %s415
      %v417 = vadd.s32 %v413, %v416
      %v418 = vadd.s32 %v414, %v416
      %v419 = vcvt.s32.f32 %v417
      %v420 = vcvt.s32.f32 %v418
      %v421 = vmul.f32 %v411, 0.0009770396
      %v422 = vmul.f32 %v419, 0.0009775171
      %v423 = vmul.f32 %v420, 0.0009775171
      %v424 = vtanh.pop %v389
      %v425 = vtanh.pop %v390
      %v426 = vtanh.pop %v391
      %v427 = vtanh.pop %v392
      %v428 = vxor.u32 %v394, 2147483648
      %v429 = vxor.u32 %v395, 2147483648
      %v430 = vmul.f32 %v428, 1.442695
      %v431 = vpow.pop %v430
      %v432 = vmul.f32 %v429, 1.442695
      %v433 = vpow.pop %v432
      %v434 = vadd.f32 %v431, 1.0
      %v435 = vadd.f32 %v433, 1.0
      %v436 = vrcp.pop %v434
      %v437 = vmul.f32 1.0, %v436
      %v438 = vrcp.pop %v435
      %v439 = vmul.f32 1.0, %v438
      %v440 = vadd.f32 %v424, %v421
      %v441 = vadd.f32 %v425, %v421
      %442 = vst [vmem:[%s381] sm:$0xff] %v440
      %443 = vst [vmem:[%s381 + $0x8] sm:$0xff] %v441
      %v444 = vadd.f32 %v426, %v422
      %v445 = vadd.f32 %v427, %v423
      %s446 = scalar_lea.vmem %s381, 16
      %447 = vst [vmem:[%s446] sm:$0xff] %v444
      %448 = vst [vmem:[%s446 + $0x8] sm:$0xff] %v445
      %s449 = scalar_lea.vmem %s381, 32
      %450 = vst [vmem:[%s449] sm:$0xff] %v437
      %451 = vst [vmem:[%s449 + $0x8] sm:$0xff] %v439
      %v452 = vld [vmem:[%s371] sm:$0xff]
      %v453 = vld [vmem:[%s371 + $0x8] sm:$0xff]
      %v454 = vld [vmem:[%s361] sm:$0xff]
      %v455 = vld [vmem:[%s361 + $0x8] sm:$0xff]
      %vm456 = vcmp.eq.s32.totalorder %v452, 0
      %vm457 = vcmp.eq.s32.totalorder %v453, 0
      %v458 = vsel %vm456, 1, 0
      %v459 = vsel %vm457, 1, 0
      %v460 = vcvt.s32.f32 %v458
      %v461 = vcvt.s32.f32 %v459
      %v462 = vmul.f32 %v460, %v437
      %v463 = vmul.f32 %v461, %v439
      %v464 = vmul.f32 %v462, %v437
      %v465 = vmul.f32 %v463, %v439
      %v466 = vadd.f32 %v464, %v465
      %467 = vadd.xlane.f32.xlu0 %v466
      %v468 = vpop.xlane.xlu0 %467
      %v469 = vrot.slane %v468, 4
      %v470 = vadd.f32 %v468, %v469
      %v471 = vrot.slane %v470, 2
      %v472 = vadd.f32 %v470, %v471
      %v473 = vrot.slane %v472, 1
      %v474 = vadd.f32 %v472, %v473
      %s475 = vtos %v474
      %vm476 = vcmp.gt.s32.totalorder %v454, 0
      %vm477 = vcmp.gt.s32.totalorder %v455, 0
      %v478 = vsel %vm476, 1, 0
      %v479 = vsel %vm477, 1, 0
      %v480 = vcvt.s32.f32 %v478
      %v481 = vcvt.s32.f32 %v479
      %v482 = vld [vmem:[%s351] sm:$0xff]
      %v483 = vld [vmem:[%s351 + $0x8] sm:$0xff]
      %v484 = vld [vmem:[%s351 + $0x10] sm:$0xff]
      %v485 = vld [vmem:[%s351 + $0x18] sm:$0xff]
      %v486 = vld [vmem:[%s351 + $0x20] sm:$0xff]
      %v487 = vld [vmem:[%s351 + $0x28] sm:$0xff]
      %v488 = vsub.f32 %v482, %v403
      %v489 = vsub.f32 %v483, %v404
      %v490 = vsub.f32 %v484, %v405
      %v491 = vsub.f32 %v485, %v406
      %v492 = vsub.f32 %v486, %v407
      %v493 = vsub.f32 %v487, %v408
      %v494 = vmul.f32 %v488, %v488
      %v495 = vmul.f32 %v489, %v489
      %v496 = vmul.f32 %v490, %v490
      %v497 = vmul.f32 %v491, %v491
      %v498 = vmul.f32 %v492, %v492
      %v499 = vmul.f32 %v493, %v493
      %v500 = vmul.f32 %v494, %v480
      %v501 = vmul.f32 %v495, %v481
      %v502 = vmul.f32 %v496, %v480
      %v503 = vmul.f32 %v497, %v481
      %v504 = vmul.f32 %v498, %v480
      %v505 = vmul.f32 %v499, %v481
      %v506 = vadd.f32 %v500, %v501
      %v507 = vadd.f32 %v506, %v502
      %v508 = vadd.f32 %v507, %v503
      %v509 = vadd.f32 %v508, %v504
      %v510 = vadd.f32 %v509, %v505
      %511 = vadd.xlane.f32.xlu0 %v510
      %v512 = vpop.xlane.xlu0 %511
      %v513 = vrot.slane %v512, 4
      %v514 = vadd.f32 %v512, %v513
      %v515 = vrot.slane %v514, 2
      %v516 = vadd.f32 %v514, %v515
      %v517 = vrot.slane %v516, 1
      %v518 = vadd.f32 %v516, %v517
      %s519 = vtos %v518
      %v520 = vadd.f32 %v480, %v481
      %521 = vadd.xlane.f32.xlu0 %v520
      %v522 = vpop.xlane.xlu0 %521
      %v523 = vrot.slane %v522, 4
      %v524 = vadd.f32 %v522, %v523
      %v525 = vrot.slane %v524, 2
      %v526 = vadd.f32 %v524, %v525
      %v527 = vrot.slane %v526, 1
      %v528 = vadd.f32 %v526, %v527
      %s529 = vtos %v528
      %s530 = smul.f32 %s529, 3.0
      %v531 = vmax.f32 %v397, %v400
      %v532 = vmax.f32 %v398, %v401
      %v533 = vsub.f32 %v397, %v531
      %v534 = vsub.f32 %v398, %v532
      %v535 = vmul.f32 %v533, 1.442695
      %v536 = vpow.pop %v535
      %v537 = vmul.f32 %v534, 1.442695
      %v538 = vpow.pop %v537
      %v539 = vsub.f32 %v400, %v531
      %v540 = vsub.f32 %v401, %v532
      %v541 = vmul.f32 %v539, 1.442695
      %v542 = vpow.pop %v541
      %v543 = vmul.f32 %v540, 1.442695
      %v544 = vpow.pop %v543
      %v545 = vadd.f32 %v536, %v542
      %v546 = vadd.f32 %v538, %v544
      %vm547 = vcmp.eq.s32.totalorder %v452, 1
      %vm548 = vcmp.eq.s32.totalorder %v453, 1
      %v549 = vsel %vm547, %v542, %v536
      %v550 = vsel %vm548, %v544, %v538
      %v551 = vrcp.pop %v545
      %v552 = vmul.f32 %v549, %v551
      %v553 = vrcp.pop %v546
      %v554 = vmul.f32 %v550, %v553
      %v555 = vsel %vm547, %v400, %v397
      %v556 = vsel %vm548, %v401, %v398
      %v557 = vlog2.pop %v545
      %v558 = vmul.f32 %v557, 0.6931472
      %v559 = vlog2.pop %v546
      %v560 = vmul.f32 %v559, 0.6931472
      %v561 = vadd.f32 %v531, %v558
      %v562 = vadd.f32 %v532, %v560
      %v563 = vsub.f32 %v555, %v561
      %v564 = vsub.f32 %v556, %v562
      %v565 = vsub.f32 1.0, %v552
      %v566 = vsub.f32 1.0, %v554
      %v567 = vmul.f32 %v565, %v565
      %v568 = vmul.f32 %v566, %v566
      %v569 = vsub.f32 0.0, %v567
      %v570 = vsub.f32 0.0, %v568
      %v571 = vmul.f32 %v569, %v563
      %v572 = vmul.f32 %v570, %v564
      %vm573 = vcmp.lt.s32.totalorder %v452, 2
      %vm574 = vcmp.lt.s32.totalorder %v453, 2
      %v575 = vsel %vm573, 1, 0
      %v576 = vsel %vm574, 1, 0
      %v577 = vcvt.s32.f32 %v575
      %v578 = vcvt.s32.f32 %v576
      %v579 = vmul.f32 %v577, %v571
      %v580 = vmul.f32 %v578, %v572
      %v581 = vadd.f32 %v579, %v580
      %582 = vadd.xlane.f32.xlu0 %v581
      %v583 = vpop.xlane.xlu0 %582
      %v584 = vrot.slane %v583, 4
      %v585 = vadd.f32 %v583, %v584
      %v586 = vrot.slane %v585, 2
      %v587 = vadd.f32 %v585, %v586
      %v588 = vrot.slane %v587, 1
      %v589 = vadd.f32 %v587, %v588
      %s590 = vtos %v589
      %v591 = vadd.f32 %v577, %v578
      %592 = vadd.xlane.f32.xlu0 %v591
      %v593 = vpop.xlane.xlu0 %592
      %v594 = vrot.slane %v593, 4
      %v595 = vadd.f32 %v593, %v594
      %v596 = vrot.slane %v595, 2
      %v597 = vadd.f32 %v595, %v596
      %v598 = vrot.slane %v597, 1
      %v599 = vadd.f32 %v597, %v598
      %s600 = vtos %v599
      %vm601 = vcmp.eq.s32.totalorder %v410, 0
      %v602 = vstv %s475
      %v603 = vsel %vm601, %v602, 0.0
      %vm604 = vcmp.eq.s32.totalorder %v410, 1
      %v605 = vstv %s519
      %v606 = vsel %vm604, %v605, %v603
      %vm607 = vcmp.eq.s32.totalorder %v410, 2
      %v608 = vstv %s530
      %v609 = vsel %vm607, %v608, %v606
      %vm610 = vcmp.eq.s32.totalorder %v410, 3
      %v611 = vstv %s590
      %v612 = vsel %vm610, %v611, %v609
      %vm613 = vcmp.eq.s32.totalorder %v410, 4
      %v614 = vstv %s600
      %v615 = vsel %vm613, %v614, %v612
      %616 = vst [vmem:[%s388] sm:$0x1] %v615
      %s617 = smul.u32 2, %s22
      %p618 = scmp.lt.s32.totalorder %s21, 1
      %s619 = scalar_select %p618, %s21, 1
      %p620 = scmp.lt.s32.totalorder %s617, 1
      %s621 = scalar_select %p620, %s617, 1
      %s622 = smul.addr %s619, 6
      %s623 = sadd.s32 %s621, %s622
      %s624 = smul.addr %s623, 8
      %s625 = scalar_lea.vmem %s4, %s624
      %p626 = scmp.lt.s32.totalorder %s21, 1
      %s627 = scalar_select %p626, %s21, 1
      %p628 = scmp.lt.s32.totalorder %s22, 0
      %s629 = scalar_select %p628, %s22, 0
      %s630 = sadd.s32 %s629, %s627
      %s631 = scalar_lea.vmem %s5, %s630
      // Predicated region
      $region37: #{_loss_impl.3} parent=35 // pred_check
        %p632 = pneg %p161
      $region38: #{_loss_impl.3} parent=35 // pred_check_branch
        %634 = sbr.rel (%p632) target = $region40
      $region39: #{_loss_impl.3} parent=35 // pred_region
        %s635 = smul.u32 2, %s22
      $region40: #{_loss_impl.3} parent=35 // pred_fallthru
        _
      // Predicated region
      $region41: #{_loss_impl.3} parent=35 // pred_check
        %p636 = pneg %p189
      $region42: #{_loss_impl.3} parent=35 // pred_check_branch
        %638 = sbr.rel (%p636) target = $region44
      $region43: #{_loss_impl.3} parent=35 // pred_region
        _
      $region44: #{_loss_impl.3} parent=35 // pred_fallthru
        _
    $region36: #{_loss_impl.3} parent=5 // pred_fallthru
      _
    %p639 = scmp.le.s32.totalorder 2, %s12
    // Predicated region
    $region45: #{_loss_impl.3} parent=5 // pred_check
      %p640 = pneg %p639
    $region46: #{_loss_impl.3} parent=5 // pred_check_branch
      %642 = sbr.rel (%p640) target = $region48
    $region47: #{_loss_impl.3} parent=5 // pred_region
      %s643 = ssub.s32 %s12, 2
      // Predicated region
      $region49: #{_loss_impl.3} parent=47 // pred_check
        %p644 = pneg %p167
      $region50: #{_loss_impl.3} parent=47 // pred_check_branch
        %646 = sbr.rel (%p644) target = $region52
      $region51: #{_loss_impl.3} parent=47 // pred_region
        %s647 = smul.u32 2, %s24
        %p648 = scmp.lt.s32.totalorder %s23, 1
        %s649 = scalar_select %p648, %s23, 1
        %p650 = scmp.lt.s32.totalorder %s647, 1
        %s651 = scalar_select %p650, %s647, 1
        %s652 = smul.addr %s649, 6
        %s653 = sadd.s32 %s651, %s652
        %s654 = smul.addr %s653, 8
        %s655 = scalar_lea.vmem %s4, %s654
      $region52: #{_loss_impl.3} parent=47 // pred_fallthru
        _
      // Predicated region
      $region53: #{_loss_impl.3} parent=47 // pred_check
        %p656 = pneg %p195
      $region54: #{_loss_impl.3} parent=47 // pred_check_branch
        %658 = sbr.rel (%p656) target = $region56
      $region55: #{_loss_impl.3} parent=47 // pred_region
        %p659 = scmp.lt.s32.totalorder %s23, 1
        %s660 = scalar_select %p659, %s23, 1
        %p661 = scmp.lt.s32.totalorder %s24, 0
        %s662 = scalar_select %p661, %s24, 0
        %s663 = sadd.s32 %s662, %s660
        %s664 = scalar_lea.vmem %s5, %s663
      $region56: #{_loss_impl.3} parent=47 // pred_fallthru
        _
    $region48: #{_loss_impl.3} parent=5 // pred_fallthru
      _
  $region6: #{_loss_impl.3} parent=0 // loop_footer
    %s16 = sadd.s32 1, %s12
  $region7: #{_loss_impl.3} parent=0 // loop_footer_branch
    %11 = sbr.rel target = $region3
  $region8: #{_loss_impl.3} parent=0 // loop_exit
    _

// kernel: _loss_impl.4
$region0: #{_loss_impl.4}
  #allocation0 [shape = 'u32[]', space=smem, size = 0x4, offset = 0x4, fixed_abs, tag = 'smem constant byte address 0x4 - core index']
  #allocation1 [shape = 'u32[144,128]{1,0:T(1,128)}', space=vmem, size = 0x12000, scoped, tag = 'internal scratch']
  #allocation2 [shape = 's32[1]{0}', space=sflag, size = 0x4, scoped, tag = 'scoped memory for _loss_impl.4']
  #allocation3 [shape = 'u8[1024]{0}', space=smem, size = 0x400, scoped, tag = 'prefetched SMEM operand 0']
  #allocation4 [shape = 'u8[512]{0}', space=smem, size = 0x200, scoped, tag = 'prefetched SMEM operand 1']
  %s0 = inlined_call_operand.vmem [shape: s32[2,25], index: 0, kind: input, shape index: {}]
  %s1 = inlined_call_operand.vmem [shape: s32[2], index: 1, kind: input, shape index: {}]
  %s2 = inlined_call_operand.vmem [shape: f32[2,10,16,128], index: 2, kind: input, shape index: {}]
  %s3 = inlined_call_operand.vmem [shape: s32[2,16,128], index: 3, kind: input, shape index: {}]
  %s4 = inlined_call_operand.vmem [shape: f32[2,1,25,128], index: 4, kind: output, shape index: {}]
  %s5 = sld [smem:[#allocation0]]
  $region48: #{_loss_impl.4} parent=0
    _
  %s7 = ssub.s32 1, %s5
  %s8 = scalar_select 0, %s7, %s5
  %s9 = sshll.u32 %s0, 4
  %s10 = int_to_ptr.vmem [resolvable:$true] %s9
  %12 = dma.vmem_to_smem %s10, 32, [#allocation3], [#allocation2]
  %s13 = sshll.u32 %s1, 4
  %s14 = int_to_ptr.vmem [resolvable:$true] %s13
  %16 = dma.vmem_to_smem %s14, 16, [#allocation4], [#allocation2]
  %17 = dma.done [#allocation2], 48
  %18 = sfence
  loop: start=0, step=1, limit=4
  $region2: #{_loss_impl.4} parent=0 // loop_pre_header
    _
  $region3: #{_loss_impl.4} parent=0 // loop_header
    %s20 = sphi 0, %s24
    %p21 = scmp.ge.s32.totalorder %s20, 4
    %s27 = sphi 0, %s39
    %s28 = sphi 0, %s35
    %s29 = sphi 0, %s27
    %s30 = sphi 0, %s28
    %s31 = sphi 0, %s29
    %s32 = sphi 0, %s30
    %s44 = sphi 0, %s46
    %s47 = sphi 0, %s44
    %s48 = sphi 0, %s47
    %s64 = sphi 0, %s48
    %s72 = sphi 0, %s74
    %s75 = sphi 0, %s72
    %s76 = sphi 0, %s75
    %s92 = sphi 0, %s76
    %s100 = sphi 0, %s102
    %s103 = sphi 0, %s100
    %s104 = sphi 0, %s103
    %s120 = sphi 0, %s104
  $region4: #{_loss_impl.4} parent=0 // loop_header_branch
    %23 = sbr.rel (%p21) target = $region8
  $region5: #{_loss_impl.4} parent=0 // loop_body
    %s25 = ssub.s32 %s20, 1
    %s26 = ssub.s32 %s20, 2
    %s33 = sadd.s32 1, %s28
    %p34 = scmp.ge.s32.totalorder %s33, 1
    %s35 = scalar_select %p34, 0, %s33
    %s36 = sadd.s32 1, %s27
    %s37 = scalar_select %p34, %s36, %s27
    %p38 = scmp.ge.s32.totalorder %s37, 2
    %s39 = scalar_select %p38, 0, %s37
    %s40 = ssub.s32 %s27, %s39
    %s41 = ssub.s32 %s28, %s35
    %s42 = sor.u32 %s40, %s41
    %p43 = scmp.eq.s32.totalorder %s42, 0
    %s45 = sadd.s32 %s44, 1
    %s46 = scalar_select %p43, %s44, %s45
    %p49 = pneg %p43
    %p50 = scmp.eq.s32.totalorder %s20, 1
    %p51 = por %p49, %p50
    %p52 = scmp.ne.s32.totalorder %s44, %s47
    %p53 = scmp.eq.s32.totalorder %s20, 0
    %p54 = por %p52, %p53
    %p55 = scmp.ne.s32.totalorder %s44, %s47
    %p56 = scmp.eq.s32.totalorder %s25, 1
    %p57 = por %p55, %p56
    %p58 = scmp.ne.s32.totalorder %s47, %s48
    %p59 = scmp.eq.s32.totalorder %s25, 0
    %p60 = por %p58, %p59
    %p61 = scmp.ne.s32.totalorder %s47, %s48
    %p62 = scmp.eq.s32.totalorder %s26, 1
    %p63 = por %p61, %p62
    %p65 = scmp.ne.s32.totalorder %s48, %s64
    %p66 = scmp.eq.s32.totalorder %s26, 0
    %p67 = por %p65, %p66
    %s68 = ssub.s32 %s27, %s39
    %s69 = ssub.s32 %s28, %s35
    %s70 = sor.u32 %s68, %s69
    %p71 = scmp.eq.s32.totalorder %s70, 0
    %s73 = sadd.s32 %s72, 1
    %s74 = scalar_select %p71, %s72, %s73
    %p77 = pneg %p71
    %p78 = scmp.eq.s32.totalorder %s20, 1
    %p79 = por %p77, %p78
    %p80 = scmp.ne.s32.totalorder %s72, %s75
    %p81 = scmp.eq.s32.totalorder %s20, 0
    %p82 = por %p80, %p81
    %p83 = scmp.ne.s32.totalorder %s72, %s75
    %p84 = scmp.eq.s32.totalorder %s25, 1
    %p85 = por %p83, %p84
    %p86 = scmp.ne.s32.totalorder %s75, %s76
    %p87 = scmp.eq.s32.totalorder %s25, 0
    %p88 = por %p86, %p87
    %p89 = scmp.ne.s32.totalorder %s75, %s76
    %p90 = scmp.eq.s32.totalorder %s26, 1
    %p91 = por %p89, %p90
    %p93 = scmp.ne.s32.totalorder %s76, %s92
    %p94 = scmp.eq.s32.totalorder %s26, 0
    %p95 = por %p93, %p94
    %s96 = ssub.s32 %s27, %s39
    %s97 = ssub.s32 %s28, %s35
    %s98 = sor.u32 %s96, %s97
    %p99 = scmp.eq.s32.totalorder %s98, 0
    %s101 = sadd.s32 %s100, 1
    %s102 = scalar_select %p99, %s100, %s101
    %p105 = pneg %p99
    %p106 = scmp.eq.s32.totalorder %s20, 1
    %p107 = por %p105, %p106
    %p108 = scmp.ne.s32.totalorder %s100, %s103
    %p109 = scmp.eq.s32.totalorder %s20, 0
    %p110 = por %p108, %p109
    %p111 = scmp.ne.s32.totalorder %s100, %s103
    %p112 = scmp.eq.s32.totalorder %s25, 1
    %p113 = por %p111, %p112
    %p114 = scmp.ne.s32.totalorder %s103, %s104
    %p115 = scmp.eq.s32.totalorder %s25, 0
    %p116 = por %p114, %p115
    %p117 = scmp.ne.s32.totalorder %s103, %s104
    %p118 = scmp.eq.s32.totalorder %s26, 1
    %p119 = por %p117, %p118
    %p121 = scmp.ne.s32.totalorder %s104, %s120
    %p122 = scmp.eq.s32.totalorder %s26, 0
    %p123 = por %p121, %p122
    %p124 = scmp.le.s32.totalorder 1, %s20
    %p125 = scmp.lt.s32.totalorder %s20, 3
    %p126 = pnand %p124, %p125
    %p127 = pneg %p126
    // Predicated region
    $region9: #{_loss_impl.4} parent=5 // pred_check
      _
    $region10: #{_loss_impl.4} parent=5 // pred_check_branch
      %129 = sbr.rel (%p126) target = $region12
    $region11: #{_loss_impl.4} parent=5 // pred_region
      %s130 = ssub.s32 %s20, 1
    $region12: #{_loss_impl.4} parent=5 // pred_fallthru
      _
    %p131 = scmp.lt.s32.totalorder %s20, 2
    // Predicated region
    $region13: #{_loss_impl.4} parent=5 // pred_check
      %p132 = pneg %p131
    $region14: #{_loss_impl.4} parent=5 // pred_check_branch
      %134 = sbr.rel (%p132) target = $region16
    $region15: #{_loss_impl.4} parent=5 // pred_region
      // Predicated region
      $region17: #{_loss_impl.4} parent=15 // pred_check
        %p135 = pneg %p54
      $region18: #{_loss_impl.4} parent=15 // pred_check_branch
        %137 = sbr.rel (%p135) target = $region20
      $region19: #{_loss_impl.4} parent=15 // pred_region
        %s138 = smul.u32 2, %s28
        %p139 = scmp.lt.s32.totalorder %s27, 1
        %s140 = scalar_select %p139, %s27, 1
        %p141 = scmp.lt.s32.totalorder %s138, 1
        %s142 = scalar_select %p141, %s138, 1
        %s143 = sadd.s32 %s142, 4
        %s144 = smul.addr %s140, 20
        %s145 = sadd.s32 %s143, %s144
        %s146 = smul.addr %s145, 8
        %s147 = scalar_lea.vmem %s2, %s146
        %s148 = smul.u32 2, %s28
      $region20: #{_loss_impl.4} parent=15 // pred_fallthru
        _
      // Predicated region
      $region21: #{_loss_impl.4} parent=15 // pred_check
        %p149 = pneg %p82
      $region22: #{_loss_impl.4} parent=15 // pred_check_branch
        %151 = sbr.rel (%p149) target = $region24
      $region23: #{_loss_impl.4} parent=15 // pred_region
        %s152 = smul.u32 2, %s28
        %p153 = scmp.lt.s32.totalorder %s27, 1
        %s154 = scalar_select %p153, %s27, 1
        %p155 = scmp.lt.s32.totalorder %s152, 1
        %s156 = scalar_select %p155, %s152, 1
        %s157 = smul.addr %s154, 2
        %s158 = sadd.s32 %s156, %s157
        %s159 = smul.addr %s158, 8
        %s160 = scalar_lea.vmem %s3, %s159
        %s161 = smul.u32 2, %s28
      $region24: #{_loss_impl.4} parent=15 // pred_fallthru
        _
    $region16: #{_loss_impl.4} parent=5 // pred_fallthru
      _
    %p162 = scmp.le.s32.totalorder 1, %s20
    %p163 = scmp.lt.s32.totalorder %s20, 3
    %p164 = pnand %p162, %p163
    %p165 = pneg %p164
    // Predicated region
    $region25: #{_loss_impl.4} parent=5 // pred_check
      _
    $region26: #{_loss_impl.4} parent=5 // pred_check_branch
      %167 = sbr.rel (%p164) target = $region28
    $region27: #{_loss_impl.4} parent=5 // pred_region
      %s168 = ssub.s32 %s20, 1
      %s169 = smul.u32 2, %s30
      %p170 = scmp.lt.s32.totalorder %s29, 1
      %s171 = scalar_select %p170, %s29, 1
      %p172 = scmp.lt.s32.totalorder %s169, 1
      %s173 = scalar_select %p172, %s169, 1
      %s174 = sadd.s32 %s173, 4
      %s175 = smul.addr %s171, 20
      %s176 = sadd.s32 %s174, %s175
      %s177 = smul.addr %s176, 8
      %s178 = scalar_lea.vmem %s2, %s177
      %p179 = pneg %p60
      %p180 = pneg %p57
      %s181 = smul.u32 2, %s30
      %p182 = scmp.lt.s32.totalorder %s29, 1
      %s183 = scalar_select %p182, %s29, 1
      %p184 = scmp.lt.s32.totalorder %s181, 1
      %s185 = scalar_select %p184, %s181, 1
      %s186 = smul.addr %s183, 2
      %s187 = sadd.s32 %s185, %s186
      %s188 = smul.addr %s187, 8
      %s189 = scalar_lea.vmem %s3, %s188
      %p190 = pneg %p88
      %p191 = pneg %p85
      %p192 = pneg %p116
      %p193 = pneg %p113
      %p194 = scmp.lt.s32.totalorder %s29, 1
      %s195 = scalar_select %p194, %s29, 1
      %p196 = scmp.lt.s32.totalorder %s30, 0
      %s197 = scalar_select %p196, %s30, 0
      %s198 = smul.addr %s197, 4
      %s199 = smul.addr %s195, 4
      %s200 = sadd.s32 %s198, %s199
      %s201 = smul.addr %s200, 8
      %s202 = scalar_lea.vmem %s4, %s201
      %s203 = smul.u32 2, %s30
      %p204 = scmp.lt.s32.totalorder %s29, 1
      %s205 = scalar_select %p204, %s29, 1
      %p206 = scmp.lt.s32.totalorder %s203, 1
      %s207 = scalar_select %p206, %s203, 1
      %s208 = sadd.s32 %s207, 4
      %s209 = smul.addr %s205, 20
      %s210 = sadd.s32 %s208, %s209
      %s211 = smul.addr %s210, 8
      %s212 = scalar_lea.vmem %s2, %s211
      %s213 = smul.u32 2, %s30
      %s214 = smul.u32 2, %s30
      %p215 = scmp.lt.s32.totalorder %s29, 1
      %s216 = scalar_select %p215, %s29, 1
      %p217 = scmp.lt.s32.totalorder %s214, 1
      %s218 = scalar_select %p217, %s214, 1
      %s219 = smul.addr %s216, 2
      %s220 = sadd.s32 %s218, %s219
      %s221 = smul.addr %s220, 8
      %s222 = scalar_lea.vmem %s3, %s221
      %s223 = smul.u32 2, %s30
      %p224 = scmp.lt.s32.totalorder %s29, 1
      %s225 = scalar_select %p224, %s29, 1
      %p226 = scmp.lt.s32.totalorder %s30, 0
      %s227 = scalar_select %p226, %s30, 0
      %s228 = smul.addr %s227, 4
      %s229 = smul.addr %s225, 4
      %s230 = sadd.s32 %s228, %s229
      %s231 = smul.addr %s230, 8
      %s232 = scalar_lea.vmem %s4, %s231
      %s233 = sld [smem:[#allocation4 + %s29]]
      %v234 = vlaneseq
      %v235 = vand.u32 %v234, 127
      %v236 = vcvt.s32.f32 %v235
      %v237 = vlaneseq
      %v238 = vshrl.u32 %v237, 7
      %v239 = vadd.s32 %v238, 8
      %s240 = smul.u32 %s30, 16
      %v241 = vstv %s240
      %v242 = vadd.s32 %v238, %v241
      %v243 = vadd.s32 %v239, %v241
      %v244 = vcvt.s32.f32 %v242
      %v245 = vcvt.s32.f32 %v243
      %v246 = vmul.f32 %v236, 0.0009770396
      %v247 = vmul.f32 %v244, 0.0009775171
      %v248 = vmul.f32 %v245, 0.0009775171
      %v249 = vadd.s32 %v238, 16
      %v250 = vadd.s32 %v238, 24
      // While loop
      $region29: #{_loss_impl.4} parent=27 // loop_pre_header
        _
      $region30: #{_loss_impl.4} parent=27 // loop_header
        %s252 = sphi 0, %s254
        %p253 = scmp.ge.s32.totalorder %s252, %s233
        %v257 = vphi 0.0, %v395
        %v258 = vphi 0.0, %v396
        %v259 = vphi 0.0, %v397
        %v260 = vphi 0.0, %v398
      $region31: #{_loss_impl.4} parent=27 // loop_header_branch
        %256 = sbr.rel (%p253) target = $region35
      $region32: #{_loss_impl.4} parent=27 // loop_body
        %s261 = sshra.s32 %s252, 7
        %s262 = sand.u32 %s252, 127
        %s263 = sadd.s32 %s261, %s29
        %s264 = smul.u32 %s263, 128
        %s265 = sshra.s32 %s252, 7
        %s266 = sand.u32 %s252, 127
        %s267 = sadd.s32 %s264, %s266
        %s268 = sld [smem:[#allocation3 + %s267]]
        %v269 = vld [vmem:[%s222] sm:$0xff]
        %v270 = vld [vmem:[%s222 + $0x8] sm:$0xff]
        %v271 = vstv %s268
        %vm272 = vcmp.eq.s32.totalorder %v269, %v271
        %vm273 = vcmp.eq.s32.totalorder %v270, %v271
        %v274 = vsel %vm272, 1, 0
        %v275 = vsel %vm273, 1, 0
        %v276 = vcvt.s32.f32 %v274
        %v277 = vcvt.s32.f32 %v275
        %v278 = vld [vmem:[%s212] sm:$0xff]
        %v279 = vld [vmem:[%s212 + $0x8] sm:$0xff]
        %s280 = scalar_lea.vmem %s212, 16
        %v281 = vld [vmem:[%s280] sm:$0xff]
        %v282 = vld [vmem:[%s280 + $0x8] sm:$0xff]
        %v283 = vmul.f32 %v278, %v276
        %v284 = vmul.f32 %v279, %v277
        %v285 = vmul.f32 %v281, %v276
        %v286 = vmul.f32 %v282, %v277
        %v287 = vadd.f32 %v276, %v277
        %288 = vadd.xlane.f32.xlu0 %v287
        %v289 = vpop.xlane.xlu0 %288
        %v290 = vrot.slane %v289, 4
        %v291 = vadd.f32 %v289, %v290
        %v292 = vrot.slane %v291, 2
        %v293 = vadd.f32 %v291, %v292
        %v294 = vrot.slane %v293, 1
        %v295 = vadd.f32 %v293, %v294
        %s296 = vtos %v295
        %v297 = vmul.f32 %v246, %v276
        %v298 = vmul.f32 %v246, %v277
        %v299 = vadd.f32 %v297, %v298
        %300 = vadd.xlane.f32.xlu0 %v299
        %v301 = vpop.xlane.xlu0 %300
        %v302 = vrot.slane %v301, 4
        %v303 = vadd.f32 %v301, %v302
        %v304 = vrot.slane %v303, 2
        %v305 = vadd.f32 %v303, %v304
        %v306 = vrot.slane %v305, 1
        %v307 = vadd.f32 %v305, %v306
        %s308 = vtos %v307
        %v309 = vmul.f32 %v247, %v276
        %v310 = vmul.f32 %v248, %v277
        %v311 = vadd.f32 %v309, %v310
        %312 = vadd.xlane.f32.xlu0 %v311
        %v313 = vpop.xlane.xlu0 %312
        %v314 = vrot.slane %v313, 4
        %v315 = vadd.f32 %v313, %v314
        %v316 = vrot.slane %v315, 2
        %v317 = vadd.f32 %v315, %v316
        %v318 = vrot.slane %v317, 1
        %v319 = vadd.f32 %v317, %v318
        %s320 = vtos %v319
        %v321 = vadd.f32 %v283, %v284
        %322 = vadd.xlane.f32.xlu0 %v321
        %v323 = vpop.xlane.xlu0 %322
        %v324 = vrot.slane %v323, 4
        %v325 = vadd.f32 %v323, %v324
        %v326 = vrot.slane %v325, 2
        %v327 = vadd.f32 %v325, %v326
        %v328 = vrot.slane %v327, 1
        %v329 = vadd.f32 %v327, %v328
        %s330 = vtos %v329
        %v331 = vadd.f32 %v285, %v286
        %332 = vadd.xlane.f32.xlu0 %v331
        %v333 = vpop.xlane.xlu0 %332
        %v334 = vrot.slane %v333, 4
        %v335 = vadd.f32 %v333, %v334
        %v336 = vrot.slane %v335, 2
        %v337 = vadd.f32 %v335, %v336
        %v338 = vrot.slane %v337, 1
        %v339 = vadd.f32 %v337, %v338
        %s340 = vtos %v339
        %v341 = vmul.f32 %v283, %v278
        %v342 = vmul.f32 %v284, %v279
        %v343 = vadd.f32 %v341, %v342
        %344 = vadd.xlane.f32.xlu0 %v343
        %v345 = vpop.xlane.xlu0 %344
        %v346 = vrot.slane %v345, 4
        %v347 = vadd.f32 %v345, %v346
        %v348 = vrot.slane %v347, 2
        %v349 = vadd.f32 %v347, %v348
        %v350 = vrot.slane %v349, 1
        %v351 = vadd.f32 %v349, %v350
        %s352 = vtos %v351
        %v353 = vmul.f32 %v285, %v281
        %v354 = vmul.f32 %v286, %v282
        %v355 = vadd.f32 %v353, %v354
        %356 = vadd.xlane.f32.xlu0 %v355
        %v357 = vpop.xlane.xlu0 %356
        %v358 = vrot.slane %v357, 4
        %v359 = vadd.f32 %v357, %v358
        %v360 = vrot.slane %v359, 2
        %v361 = vadd.f32 %v359, %v360
        %v362 = vrot.slane %v361, 1
        %v363 = vadd.f32 %v361, %v362
        %s364 = vtos %v363
        %vm365 = vcmp.eq.s32.totalorder %v235, 0
        %v366 = vstv %s296
        %v367 = vsel %vm365, %v366, 0.0
        %vm368 = vcmp.eq.s32.totalorder %v235, 1
        %v369 = vstv %s308
        %v370 = vsel %vm368, %v369, %v367
        %vm371 = vcmp.eq.s32.totalorder %v235, 2
        %v372 = vstv %s320
        %v373 = vsel %vm371, %v372, %v370
        %vm374 = vcmp.eq.s32.totalorder %v235, 3
        %v375 = vstv %s330
        %v376 = vsel %vm374, %v375, %v373
        %vm377 = vcmp.eq.s32.totalorder %v235, 4
        %v378 = vstv %s340
        %v379 = vsel %vm377, %v378, %v376
        %vm380 = vcmp.eq.s32.totalorder %v235, 5
        %v381 = vstv %s352
        %v382 = vsel %vm380, %v381, %v379
        %vm383 = vcmp.eq.s32.totalorder %v235, 6
        %v384 = vstv %s364
        %v385 = vsel %vm383, %v384, %v382
        %v386 = vstv %s252
        %vm387 = vcmp.eq.s32.totalorder %v238, %v386
        %vm388 = vcmp.eq.s32.totalorder %v239, %v386
        %vm389 = vcmp.eq.s32.totalorder %v249, %v386
        %vm390 = vcmp.eq.s32.totalorder %v250, %v386
        %v391 = vsel %vm387, %v385, 0.0
        %v392 = vsel %vm388, %v385, 0.0
        %v393 = vsel %vm389, %v385, 0.0
        %v394 = vsel %vm390, %v385, 0.0
        %v395 = vadd.f32 %v257, %v391
        %v396 = vadd.f32 %v258, %v392
        %v397 = vadd.f32 %v259, %v393
        %v398 = vadd.f32 %v260, %v394
      $region33: #{_loss_impl.4} parent=27 // loop_footer
        %s254 = sadd.s32 %s252, 1
      $region34: #{_loss_impl.4} parent=27 // loop_footer_branch
        %251 = sbr.rel target = $region30
      $region35: #{_loss_impl.4} parent=27 // loop_exit
        _
      %399 = vst [vmem:[%s232] sm:$0xff] %v257
      %400 = vst [vmem:[%s232 + $0x8] sm:$0xff] %v258
      %401 = vst [vmem:[%s232 + $0x10] sm:$0xff] %v259
      %402 = vst [vmem:[%s232 + $0x18] sm:$0x1] %v260
      %p403 = scmp.lt.s32.totalorder %s29, 1
      %s404 = scalar_select %p403, %s29, 1
      %p405 = scmp.lt.s32.totalorder %s30, 0
      %s406 = scalar_select %p405, %s30, 0
      %s407 = smul.addr %s406, 4
      %s408 = smul.addr %s404, 4
      %s409 = sadd.s32 %s407, %s408
      %s410 = smul.addr %s409, 8
      %s411 = scalar_lea.vmem %s4, %s410
      // Predicated region
      $region36: #{_loss_impl.4} parent=27 // pred_check
        %p412 = pneg %p113
      $region37: #{_loss_impl.4} parent=27 // pred_check_branch
        %414 = sbr.rel (%p412) target = $region39
      $region38: #{_loss_impl.4} parent=27 // pred_region
        _
      $region39: #{_loss_impl.4} parent=27 // pred_fallthru
        _
    $region28: #{_loss_impl.4} parent=5 // pred_fallthru
      _
    %p415 = scmp.le.s32.totalorder 2, %s20
    // Predicated region
    $region40: #{_loss_impl.4} parent=5 // pred_check
      %p416 = pneg %p415
    $region41: #{_loss_impl.4} parent=5 // pred_check_branch
      %418 = sbr.rel (%p416) target = $region43
    $region42: #{_loss_impl.4} parent=5 // pred_region
      %s419 = ssub.s32 %s20, 2
      // Predicated region
      $region44: #{_loss_impl.4} parent=42 // pred_check
        %p420 = pneg %p119
      $region45: #{_loss_impl.4} parent=42 // pred_check_branch
        %422 = sbr.rel (%p420) target = $region47
      $region46: #{_loss_impl.4} parent=42 // pred_region
        %p423 = scmp.lt.s32.totalorder %s31, 1
        %s424 = scalar_select %p423, %s31, 1
        %p425 = scmp.lt.s32.totalorder %s32, 0
        %s426 = scalar_select %p425, %s32, 0
        %s427 = smul.addr %s426, 4
        %s428 = smul.addr %s424, 4
        %s429 = sadd.s32 %s427, %s428
        %s430 = smul.addr %s429, 8
        %s431 = scalar_lea.vmem %s4, %s430
      $region47: #{_loss_impl.4} parent=42 // pred_fallthru
        _
    $region43: #{_loss_impl.4} parent=5 // pred_fallthru
      _
  $region6: #{_loss_impl.4} parent=0 // loop_footer
    %s24 = sadd.s32 1, %s20
  $region7: #{_loss_impl.4} parent=0 // loop_footer_branch
    %19 = sbr.rel target = $region3
  $region8: #{_loss_impl.4} parent=0 // loop_exit
    _

// kernel: _loss_impl.5
$region0: #{_loss_impl.5}
  #allocation0 [shape = 'u32[]', space=smem, size = 0x4, offset = 0x4, fixed_abs, tag = 'smem constant byte address 0x4 - core index']
  #allocation1 [shape = 'u32[144,128]{1,0:T(1,128)}', space=vmem, size = 0x12000, scoped, tag = 'internal scratch']
  #allocation2 [shape = 's32[1]{0}', space=sflag, size = 0x4, scoped, tag = 'scoped memory for _loss_impl.5']
  #allocation3 [shape = 'u8[1024]{0}', space=smem, size = 0x400, scoped, tag = 'prefetched SMEM operand 0']
  #allocation4 [shape = 'u8[512]{0}', space=smem, size = 0x200, scoped, tag = 'prefetched SMEM operand 1']
  %s0 = inlined_call_operand.vmem [shape: s32[2,25], index: 0, kind: input, shape index: {}]
  %s1 = inlined_call_operand.vmem [shape: s32[2], index: 1, kind: input, shape index: {}]
  %s2 = inlined_call_operand.vmem [shape: f32[2,25], index: 2, kind: input, shape index: {}]
  %s3 = inlined_call_operand.vmem [shape: f32[2,25], index: 3, kind: input, shape index: {}]
  %s4 = inlined_call_operand.vmem [shape: f32[2,25], index: 4, kind: input, shape index: {}]
  %s5 = inlined_call_operand.vmem [shape: f32[2,25], index: 5, kind: input, shape index: {}]
  %s6 = inlined_call_operand.vmem [shape: f32[2,3,16,128], index: 6, kind: input, shape index: {}]
  %s7 = inlined_call_operand.vmem [shape: s32[2,16,128], index: 7, kind: input, shape index: {}]
  %s8 = inlined_call_operand.vmem [shape: bf16[2,25,16,128], index: 8, kind: output, shape index: {0}]
  %s9 = inlined_call_operand.vmem [shape: bf16[2,25,16,128], index: 9, kind: output, shape index: {1}]
  %s10 = inlined_call_operand.hbm [shape: f32[2,25,1,128], index: 10, kind: output, shape index: {2}]
  %11 = xla_tuple %s8, %s9, %s10
  %s12 = sld [smem:[#allocation0]]
  $region97: #{_loss_impl.5} parent=0
    _
  %s14 = ssub.s32 1, %s12
  %s15 = scalar_select 0, %s14, %s12
  %s16 = sshll.u32 %s0, 4
  %s17 = int_to_ptr.vmem [resolvable:$true] %s16
  %19 = dma.vmem_to_smem %s17, 32, [#allocation3], [#allocation2]
  %s20 = sshll.u32 %s1, 4
  %s21 = int_to_ptr.vmem [resolvable:$true] %s20
  %23 = dma.vmem_to_smem %s21, 16, [#allocation4], [#allocation2]
  %24 = dma.done [#allocation2], 48
  %25 = sfence
  $region1: #{_loss_impl.5} parent=0
    #allocation5 [shape = 'u8[1024]{0}', space=smem, size = 0x400, scoped, tag = 'input window, operand 2, single buffered']
    #allocation6 [shape = 's32[2]{0}', space=sflag, size = 0x8, scoped, tag = 'scoped memory for _loss_impl.5']
    #allocation7 [shape = 's32[2]{0}', space=sflag, size = 0x8, scoped, tag = 'scoped memory for _loss_impl.5']
    #allocation8 [shape = 'u8[1024]{0}', space=smem, size = 0x400, scoped, tag = 'input window, operand 3, single buffered']
    #allocation9 [shape = 's32[1]{0}', space=sflag, size = 0x4, scoped, tag = 'scoped memory for _loss_impl.5']
    #allocation10 [shape = 'u8[1024]{0}', space=smem, size = 0x400, scoped, tag = 'input window, operand 4, single buffered']
    #allocation11 [shape = 'u8[1024]{0}', space=smem, size = 0x400, scoped, tag = 'input window, operand 5, single buffered']
    #allocation12 [shape = 's32[1]{0}', space=sflag, size = 0x4, scoped, tag = 'scoped memory for _loss_impl.5']
    #allocation13 [shape = 'u8[1024]{0}', space=vmem, size = 0x400, scoped, tag = 'output window, operand 2']
    %26 = vsyncpa [#allocation7], 0
    %27 = vsyncpa [#allocation9], 0
    %28 = vsyncpa [#allocation12], 0
    %29 = vsyncpa [#allocation6], 0
    %s30 = scalar_lea.sflag [#allocation6], 1
    %31 = vsyncpa %s30, 0
    loop: start=0, step=1, limit=52
    $region2: #{_loss_impl.5} parent=1 // loop_pre_header
      _
    $region3: #{_loss_impl.5} parent=1 // loop_header
      %s33 = sphi 0, %s37
      %p34 = scmp.ge.s32.totalorder %s33, 52
      %s40 = sphi 0, %s59
      %s41 = sphi 0, %s55
      %s42 = sphi 0, %s51
      %s43 = sphi 0, %s40
      %s44 = sphi 0, %s41
      %s45 = sphi 0, %s42
      %s46 = sphi 0, %s43
      %s47 = sphi 0, %s44
      %s48 = sphi 0, %s45
      %s60 = sphi 0, %s60
      %s62 = sphi 0, %s60
      %s63 = sphi 0, %s62
      %s77 = sphi 0, %s63
      %s81 = sphi 0, %s81
      %s83 = sphi 0, %s81
      %s84 = sphi 0, %s83
      %s98 = sphi 0, %s84
      %s102 = sphi 0, %s102
      %s104 = sphi 0, %s102
      %s105 = sphi 0, %s104
      %s119 = sphi 0, %s105
      %s123 = sphi 0, %s123
      %s125 = sphi 0, %s123
      %s126 = sphi 0, %s125
      %s140 = sphi 0, %s126
      %s148 = sphi 0, %s150
      %s151 = sphi 0, %s148
      %s152 = sphi 0, %s151
      %s168 = sphi 0, %s152
      %s176 = sphi 0, %s178
      %s179 = sphi 0, %s176
      %s180 = sphi 0, %s179
      %s196 = sphi 0, %s180
      %s206 = sphi 0, %s208
      %s209 = sphi 0, %s206
      %s210 = sphi 0, %s209
      %s226 = sphi 0, %s210
      %s236 = sphi 0, %s238
      %s239 = sphi 0, %s236
      %s240 = sphi 0, %s239
      %s256 = sphi 0, %s240
      %s266 = sphi 0, %s268
      %s269 = sphi 0, %s266
      %s270 = sphi 0, %s269
      %s286 = sphi 0, %s270
    $region4: #{_loss_impl.5} parent=1 // loop_header_branch
      %36 = sbr.rel (%p34) target = $region8
    $region5: #{_loss_impl.5} parent=1 // loop_body
      %s38 = ssub.s32 %s33, 1
      %s39 = ssub.s32 %s33, 2
      %s49 = sadd.s32 1, %s42
      %p50 = scmp.ge.s32.totalorder %s49, 25
      %s51 = scalar_select %p50, 0, %s49
      %s52 = sadd.s32 1, %s41
      %s53 = scalar_select %p50, %s52, %s41
      %p54 = scmp.ge.s32.totalorder %s53, 1
      %s55 = scalar_select %p54, 0, %s53
      %s56 = sadd.s32 1, %s40
      %s57 = scalar_select %p54, %s56, %s40
      %p58 = scmp.ge.s32.totalorder %s57, 2
      %s59 = scalar_select %p58, 0, %s57
      %s61 = sadd.s32 %s60, 1
      %p64 = scmp.eq.s32.totalorder %s33, 49
      %p65 = scmp.ne.s32.totalorder %s60, %s62
      %p66 = scmp.eq.s32.totalorder %s33, 0
      %p67 = por %p65, %p66
      %p68 = scmp.ne.s32.totalorder %s60, %s62
      %p69 = scmp.eq.s32.totalorder %s38, 49
      %p70 = por %p68, %p69
      %p71 = scmp.ne.s32.totalorder %s62, %s63
      %p72 = scmp.eq.s32.totalorder %s38, 0
      %p73 = por %p71, %p72
      %p74 = scmp.ne.s32.totalorder %s62, %s63
      %p75 = scmp.eq.s32.totalorder %s39, 49
      %p76 = por %p74, %p75
      %p78 = scmp.ne.s32.totalorder %s63, %s77
      %p79 = scmp.eq.s32.totalorder %s39, 0
      %p80 = por %p78, %p79
      %s82 = sadd.s32 %s81, 1
      %p85 = scmp.eq.s32.totalorder %s33, 49
      %p86 = scmp.ne.s32.totalorder %s81, %s83
      %p87 = scmp.eq.s32.totalorder %s33, 0
      %p88 = por %p86, %p87
      %p89 = scmp.ne.s32.totalorder %s81, %s83
      %p90 = scmp.eq.s32.totalorder %s38, 49
      %p91 = por %p89, %p90
      %p92 = scmp.ne.s32.totalorder %s83, %s84
      %p93 = scmp.eq.s32.totalorder %s38, 0
      %p94 = por %p92, %p93
      %p95 = scmp.ne.s32.totalorder %s83, %s84
      %p96 = scmp.eq.s32.totalorder %s39, 49
      %p97 = por %p95, %p96
      %p99 = scmp.ne.s32.totalorder %s84, %s98
      %p100 = scmp.eq.s32.totalorder %s39, 0
      %p101 = por %p99, %p100
      %s103 = sadd.s32 %s102, 1
      %p106 = scmp.eq.s32.totalorder %s33, 49
      %p107 = scmp.ne.s32.totalorder %s102, %s104
      %p108 = scmp.eq.s32.totalorder %s33, 0
      %p109 = por %p107, %p108
      %p110 = scmp.ne.s32.totalorder %s102, %s104
      %p111 = scmp.eq.s32.totalorder %s38, 49
      %p112 = por %p110, %p111
      %p113 = scmp.ne.s32.totalorder %s104, %s105
      %p114 = scmp.eq.s32.totalorder %s38, 0
      %p115 = por %p113, %p114
      %p116 = scmp.ne.s32.totalorder %s104, %s105
      %p117 = scmp.eq.s32.totalorder %s39, 49
      %p118 = por %p116, %p117
      %p120 = scmp.ne.s32.totalorder %s105, %s119
      %p121 = scmp.eq.s32.totalorder %s39, 0
      %p122 = por %p120, %p121
      %s124 = sadd.s32 %s123, 1
      %p127 = scmp.eq.s32.totalorder %s33, 49
      %p128 = scmp.ne.s32.totalorder %s123, %s125
      %p129 = scmp.eq.s32.totalorder %s33, 0
      %p130 = por %p128, %p129
      %p131 = scmp.ne.s32.totalorder %s123, %s125
      %p132 = scmp.eq.s32.totalorder %s38, 49
      %p133 = por %p131, %p132
      %p134 = scmp.ne.s32.totalorder %s125, %s126
      %p135 = scmp.eq.s32.totalorder %s38, 0
      %p136 = por %p134, %p135
      %p137 = scmp.ne.s32.totalorder %s125, %s126
      %p138 = scmp.eq.s32.totalorder %s39, 49
      %p139 = por %p137, %p138
      %p141 = scmp.ne.s32.totalorder %s126, %s140
      %p142 = scmp.eq.s32.totalorder %s39, 0
      %p143 = por %p141, %p142
      %s144 = ssub.s32 %s40, %s59
      %s145 = ssub.s32 %s41, %s55
      %s146 = sor.u32 %s144, %s145
      %p147 = scmp.eq.s32.totalorder %s146, 0
      %s149 = sadd.s32 %s148, 1
      %s150 = scalar_select %p147, %s148, %s149
      %p153 = pneg %p147
      %p154 = scmp.eq.s32.totalorder %s33, 49
      %p155 = por %p153, %p154
      %p156 = scmp.ne.s32.totalorder %s148, %s151
      %p157 = scmp.eq.s32.totalorder %s33, 0
      %p158 = por %p156, %p157
      %p159 = scmp.ne.s32.totalorder %s148, %s151
      %p160 = scmp.eq.s32.totalorder %s38, 49
      %p161 = por %p159, %p160
      %p162 = scmp.ne.s32.totalorder %s151, %s152
      %p163 = scmp.eq.s32.totalorder %s38, 0
      %p164 = por %p162, %p163
      %p165 = scmp.ne.s32.totalorder %s151, %s152
      %p166 = scmp.eq.s32.totalorder %s39, 49
      %p167 = por %p165, %p166
      %p169 = scmp.ne.s32.totalorder %s152, %s168
      %p170 = scmp.eq.s32.totalorder %s39, 0
      %p171 = por %p169, %p170
      %s172 = ssub.s32 %s40, %s59
      %s173 = ssub.s32 %s41, %s55
      %s174 = sor.u32 %s172, %s173
      %p175 = scmp.eq.s32.totalorder %s174, 0
      %s177 = sadd.s32 %s176, 1
      %s178 = scalar_select %p175, %s176, %s177
      %p181 = pneg %p175
      %p182 = scmp.eq.s32.totalorder %s33, 49
      %p183 = por %p181, %p182
      %p184 = scmp.ne.s32.totalorder %s176, %s179
      %p185 = scmp.eq.s32.totalorder %s33, 0
      %p186 = por %p184, %p185
      %p187 = scmp.ne.s32.totalorder %s176, %s179
      %p188 = scmp.eq.s32.totalorder %s38, 49
      %p189 = por %p187, %p188
      %p190 = scmp.ne.s32.totalorder %s179, %s180
      %p191 = scmp.eq.s32.totalorder %s38, 0
      %p192 = por %p190, %p191
      %p193 = scmp.ne.s32.totalorder %s179, %s180
      %p194 = scmp.eq.s32.totalorder %s39, 49
      %p195 = por %p193, %p194
      %p197 = scmp.ne.s32.totalorder %s180, %s196
      %p198 = scmp.eq.s32.totalorder %s39, 0
      %p199 = por %p197, %p198
      %s200 = ssub.s32 %s40, %s59
      %s201 = ssub.s32 %s42, %s51
      %s202 = sor.u32 %s200, %s201
      %s203 = ssub.s32 %s41, %s55
      %s204 = sor.u32 %s202, %s203
      %p205 = scmp.eq.s32.totalorder %s204, 0
      %s207 = sadd.s32 %s206, 1
      %s208 = scalar_select %p205, %s206, %s207
      %p211 = pneg %p205
      %p212 = scmp.eq.s32.totalorder %s33, 49
      %p213 = por %p211, %p212
      %p214 = scmp.ne.s32.totalorder %s206, %s209
      %p215 = scmp.eq.s32.totalorder %s33, 0
      %p216 = por %p214, %p215
      %p217 = scmp.ne.s32.totalorder %s206, %s209
      %p218 = scmp.eq.s32.totalorder %s38, 49
      %p219 = por %p217, %p218
      %p220 = scmp.ne.s32.totalorder %s209, %s210
      %p221 = scmp.eq.s32.totalorder %s38, 0
      %p222 = por %p220, %p221
      %p223 = scmp.ne.s32.totalorder %s209, %s210
      %p224 = scmp.eq.s32.totalorder %s39, 49
      %p225 = por %p223, %p224
      %p227 = scmp.ne.s32.totalorder %s210, %s226
      %p228 = scmp.eq.s32.totalorder %s39, 0
      %p229 = por %p227, %p228
      %s230 = ssub.s32 %s40, %s59
      %s231 = ssub.s32 %s42, %s51
      %s232 = sor.u32 %s230, %s231
      %s233 = ssub.s32 %s41, %s55
      %s234 = sor.u32 %s232, %s233
      %p235 = scmp.eq.s32.totalorder %s234, 0
      %s237 = sadd.s32 %s236, 1
      %s238 = scalar_select %p235, %s236, %s237
      %p241 = pneg %p235
      %p242 = scmp.eq.s32.totalorder %s33, 49
      %p243 = por %p241, %p242
      %p244 = scmp.ne.s32.totalorder %s236, %s239
      %p245 = scmp.eq.s32.totalorder %s33, 0
      %p246 = por %p244, %p245
      %p247 = scmp.ne.s32.totalorder %s236, %s239
      %p248 = scmp.eq.s32.totalorder %s38, 49
      %p249 = por %p247, %p248
      %p250 = scmp.ne.s32.totalorder %s239, %s240
      %p251 = scmp.eq.s32.totalorder %s38, 0
      %p252 = por %p250, %p251
      %p253 = scmp.ne.s32.totalorder %s239, %s240
      %p254 = scmp.eq.s32.totalorder %s39, 49
      %p255 = por %p253, %p254
      %p257 = scmp.ne.s32.totalorder %s240, %s256
      %p258 = scmp.eq.s32.totalorder %s39, 0
      %p259 = por %p257, %p258
      %s260 = sadd.s32 %s42, %s41
      %s261 = sadd.s32 %s51, %s55
      %s262 = ssub.s32 %s40, %s59
      %s263 = ssub.s32 %s260, %s261
      %s264 = sor.u32 %s262, %s263
      %p265 = scmp.eq.s32.totalorder %s264, 0
      %s267 = sadd.s32 %s266, 1
      %s268 = scalar_select %p265, %s266, %s267
      %p271 = pneg %p265
      %p272 = scmp.eq.s32.totalorder %s33, 49
      %p273 = por %p271, %p272
      %p274 = scmp.ne.s32.totalorder %s266, %s269
      %p275 = scmp.eq.s32.totalorder %s33, 0
      %p276 = por %p274, %p275
      %p277 = scmp.ne.s32.totalorder %s266, %s269
      %p278 = scmp.eq.s32.totalorder %s38, 49
      %p279 = por %p277, %p278
      %p280 = scmp.ne.s32.totalorder %s269, %s270
      %p281 = scmp.eq.s32.totalorder %s38, 0
      %p282 = por %p280, %p281
      %p283 = scmp.ne.s32.totalorder %s269, %s270
      %p284 = scmp.eq.s32.totalorder %s39, 49
      %p285 = por %p283, %p284
      %p287 = scmp.ne.s32.totalorder %s270, %s286
      %p288 = scmp.eq.s32.totalorder %s39, 0
      %p289 = por %p287, %p288
      %p290 = scmp.le.s32.totalorder 1, %s33
      %p291 = scmp.lt.s32.totalorder %s33, 51
      %p292 = pnand %p290, %p291
      %p293 = pneg %p292
      // Predicated region
      $region9: #{_loss_impl.5} parent=5 // pred_check
        _
      $region10: #{_loss_impl.5} parent=5 // pred_check_branch
        %295 = sbr.rel (%p292) target = $region12
      $region11: #{_loss_impl.5} parent=5 // pred_region
        %s296 = ssub.s32 %s33, 1
        // Predicated region
        $region13: #{_loss_impl.5} parent=11 // pred_check
          %p297 = pneg %p73
        $region14: #{_loss_impl.5} parent=11 // pred_check_branch
          %299 = sbr.rel (%p297) target = $region16
        $region15: #{_loss_impl.5} parent=11 // pred_region
          %s301 = ssub.s32 32, 32
          %302 = vsyncadd [#allocation7], %s301
          %s304 = sshll.u32 %s2, 4
          %s305 = int_to_ptr.vmem [resolvable:$true] %s304
          %307 = dma.vmem_to_smem %s305, 32, [#allocation5], [#allocation7]
        $region16: #{_loss_impl.5} parent=11 // pred_fallthru
          _
        // Predicated region
        $region17: #{_loss_impl.5} parent=11 // pred_check
          %p308 = pneg %p94
        $region18: #{_loss_impl.5} parent=11 // pred_check_branch
          %310 = sbr.rel (%p308) target = $region20
        $region19: #{_loss_impl.5} parent=11 // pred_region
          %s312 = ssub.s32 32, 32
          %313 = vsyncadd [#allocation9], %s312
          %s315 = sshll.u32 %s3, 4
          %s316 = int_to_ptr.vmem [resolvable:$true] %s315
          %318 = dma.vmem_to_smem %s316, 32, [#allocation8], [#allocation9]
        $region20: #{_loss_impl.5} parent=11 // pred_fallthru
          _
        // Predicated region
        $region21: #{_loss_impl.5} parent=11 // pred_check
          %p319 = pneg %p115
        $region22: #{_loss_impl.5} parent=11 // pred_check_branch
          %321 = sbr.rel (%p319) target = $region24
        $region23: #{_loss_impl.5} parent=11 // pred_region
          %s323 = ssub.s32 32, 32
          %324 = vsyncadd [#allocation9], %s323
          %s326 = sshll.u32 %s4, 4
          %s327 = int_to_ptr.vmem [resolvable:$true] %s326
          %329 = dma.vmem_to_smem %s327, 32, [#allocation10], [#allocation9]
        $region24: #{_loss_impl.5} parent=11 // pred_fallthru
          _
        // Predicated region
        $region25: #{_loss_impl.5} parent=11 // pred_check
          %p330 = pneg %p136
        $region26: #{_loss_impl.5} parent=11 // pred_check_branch
          %332 = sbr.rel (%p330) target = $region28
        $region27: #{_loss_impl.5} parent=11 // pred_region
          %s334 = ssub.s32 32, 32
          %335 = vsyncadd [#allocation12], %s334
          %s337 = sshll.u32 %s5, 4
          %s338 = int_to_ptr.vmem [resolvable:$true] %s337
          %340 = dma.vmem_to_smem %s338, 32, [#allocation11], [#allocation12]
        $region28: #{_loss_impl.5} parent=11 // pred_fallthru
          _
      $region12: #{_loss_impl.5} parent=5 // pred_fallthru
        _
      %p341 = scmp.lt.s32.totalorder %s33, 50
      // Predicated region
      $region29: #{_loss_impl.5} parent=5 // pred_check
        %p342 = pneg %p341
      $region30: #{_loss_impl.5} parent=5 // pred_check_branch
        %344 = sbr.rel (%p342) target = $region32
      $region31: #{_loss_impl.5} parent=5 // pred_region
        // Predicated region
        $region33: #{_loss_impl.5} parent=31 // pred_check
          %p345 = pneg %p158
        $region34: #{_loss_impl.5} parent=31 // pred_check_branch
          %347 = sbr.rel (%p345) target = $region36
        $region35: #{_loss_impl.5} parent=31 // pred_region
          %s348 = smul.u32 2, %s41
          %p349 = scmp.lt.s32.totalorder %s40, 1
          %s350 = scalar_select %p349, %s40, 1
          %p351 = scmp.lt.s32.totalorder %s348, 1
          %s352 = scalar_select %p351, %s348, 1
          %s353 = smul.addr %s350, 6
          %s354 = sadd.s32 %s352, %s353
          %s355 = smul.addr %s354, 8
          %s356 = scalar_lea.vmem %s6, %s355
          %s357 = smul.u32 2, %s41
        $region36: #{_loss_impl.5} parent=31 // pred_fallthru
          _
        // Predicated region
        $region37: #{_loss_impl.5} parent=31 // pred_check
          %p358 = pneg %p186
        $region38: #{_loss_impl.5} parent=31 // pred_check_branch
          %360 = sbr.rel (%p358) target = $region40
        $region39: #{_loss_impl.5} parent=31 // pred_region
          %s361 = smul.u32 2, %s41
          %p362 = scmp.lt.s32.totalorder %s40, 1
          %s363 = scalar_select %p362, %s40, 1
          %p364 = scmp.lt.s32.totalorder %s361, 1
          %s365 = scalar_select %p364, %s361, 1
          %s366 = smul.addr %s363, 2
          %s367 = sadd.s32 %s365, %s366
          %s368 = smul.addr %s367, 8
          %s369 = scalar_lea.vmem %s7, %s368
          %s370 = smul.u32 2, %s41
        $region40: #{_loss_impl.5} parent=31 // pred_fallthru
          _
      $region32: #{_loss_impl.5} parent=5 // pred_fallthru
        _
      %p371 = scmp.le.s32.totalorder 1, %s33
      %p372 = scmp.lt.s32.totalorder %s33, 51
      %p373 = pnand %p371, %p372
      %p374 = pneg %p373
      // Predicated region
      $region41: #{_loss_impl.5} parent=5 // pred_check
        _
      $region42: #{_loss_impl.5} parent=5 // pred_check_branch
        %376 = sbr.rel (%p373) target = $region44
      $region43: #{_loss_impl.5} parent=5 // pred_region
        %s377 = ssub.s32 %s33, 1
        // Predicated region
        $region45: #{_loss_impl.5} parent=43 // pred_check
          %p378 = pneg %p73
        $region46: #{_loss_impl.5} parent=43 // pred_check_branch
          %380 = sbr.rel (%p378) target = $region48
        $region47: #{_loss_impl.5} parent=43 // pred_region
          %381 = dma.done [#allocation7], 32
        $region48: #{_loss_impl.5} parent=43 // pred_fallthru
          _
        // Predicated region
        $region49: #{_loss_impl.5} parent=43 // pred_check
          %p382 = pneg %p94
        $region50: #{_loss_impl.5} parent=43 // pred_check_branch
          %384 = sbr.rel (%p382) target = $region52
        $region51: #{_loss_impl.5} parent=43 // pred_region
          %385 = dma.done [#allocation9], 32
        $region52: #{_loss_impl.5} parent=43 // pred_fallthru
          _
        // Predicated region
        $region53: #{_loss_impl.5} parent=43 // pred_check
          %p386 = pneg %p115
        $region54: #{_loss_impl.5} parent=43 // pred_check_branch
          %388 = sbr.rel (%p386) target = $region56
        $region55: #{_loss_impl.5} parent=43 // pred_region
          %389 = dma.done [#allocation9], 32
        $region56: #{_loss_impl.5} parent=43 // pred_fallthru
          _
        // Predicated region
        $region57: #{_loss_impl.5} parent=43 // pred_check
          %p390 = pneg %p136
        $region58: #{_loss_impl.5} parent=43 // pred_check_branch
          %392 = sbr.rel (%p390) target = $region60
        $region59: #{_loss_impl.5} parent=43 // pred_region
          %393 = dma.done [#allocation12], 32
        $region60: #{_loss_impl.5} parent=43 // pred_fallthru
          _
        %394 = sfence
        %p395 = pneg %p73
        %p396 = pneg %p70
        %p397 = pneg %p94
        %p398 = pneg %p91
        %p399 = pneg %p115
        %p400 = pneg %p112
        %p401 = pneg %p136
        %p402 = pneg %p133
        %s403 = smul.u32 2, %s44
        %p404 = scmp.lt.s32.totalorder %s43, 1
        %s405 = scalar_select %p404, %s43, 1
        %p406 = scmp.lt.s32.totalorder %s403, 1
        %s407 = scalar_select %p406, %s403, 1
        %s408 = smul.addr %s405, 6
        %s409 = sadd.s32 %s407, %s408
        %s410 = smul.addr %s409, 8
        %s411 = scalar_lea.vmem %s6, %s410
        %p412 = pneg %p164
        %p413 = pneg %p161
        %s414 = smul.u32 2, %s44
        %p415 = scmp.lt.s32.totalorder %s43, 1
        %s416 = scalar_select %p415, %s43, 1
        %p417 = scmp.lt.s32.totalorder %s414, 1
        %s418 = scalar_select %p417, %s414, 1
        %s419 = smul.addr %s416, 2
        %s420 = sadd.s32 %s418, %s419
        %s421 = smul.addr %s420, 8
        %s422 = scalar_lea.vmem %s7, %s421
        %p423 = pneg %p192
        %p424 = pneg %p189
        %p425 = pneg %p222
        %p426 = pneg %p219
        %s427 = smul.u32 2, %s44
        %p428 = scmp.lt.s32.totalorder %s43, 1
        %s429 = scalar_select %p428, %s43, 1
        %p430 = scmp.lt.s32.totalorder %s45, 24
        %s431 = scalar_select %p430, %s45, 24
        %p432 = scmp.lt.s32.totalorder %s427, 1
        %s433 = scalar_select %p432, %s427, 1
        %s434 = smul.addr %s431, 2
        %s435 = sadd.s32 %s433, %s434
        %s436 = smul.addr %s429, 50
        %s437 = sadd.s32 %s435, %s436
        %s438 = smul.addr %s437, 4
        %s439 = scalar_lea.vmem %s8, %s438
        %p440 = pneg %p252
        %p441 = pneg %p249
        %s442 = smul.u32 2, %s44
        %p443 = scmp.lt.s32.totalorder %s43, 1
        %s444 = scalar_select %p443, %s43, 1
        %p445 = scmp.lt.s32.totalorder %s45, 24
        %s446 = scalar_select %p445, %s45, 24
        %p447 = scmp.lt.s32.totalorder %s442, 1
        %s448 = scalar_select %p447, %s442, 1
        %s449 = smul.addr %s446, 2
        %s450 = sadd.s32 %s448, %s449
        %s451 = smul.addr %s444, 50
        %s452 = sadd.s32 %s450, %s451
        %s453 = smul.addr %s452, 4
        %s454 = scalar_lea.vmem %s9, %s453
        %p455 = pneg %p282
        %p456 = pneg %p279
        %s457 = sand.u32 %s269, 1
        %s458 = scalar_lea.sflag [#allocation6], %s457
        %s459 = sand.u32 %s269, 1
        %s460 = scalar_lea.vmem [#allocation13], %s459
        %s461 = smul.u32 2, %s44
        %p462 = scmp.lt.s32.totalorder %s43, 1
        %s463 = scalar_select %p462, %s43, 1
        %p464 = scmp.lt.s32.totalorder %s461, 1
        %s465 = scalar_select %p464, %s461, 1
        %s466 = smul.addr %s463, 6
        %s467 = sadd.s32 %s465, %s466
        %s468 = smul.addr %s467, 8
        %s469 = scalar_lea.vmem %s6, %s468
        %s470 = smul.u32 2, %s44
        %s471 = smul.u32 2, %s44
        %p472 = scmp.lt.s32.totalorder %s43, 1
        %s473 = scalar_select %p472, %s43, 1
        %p474 = scmp.lt.s32.totalorder %s471, 1
        %s475 = scalar_select %p474, %s471, 1
        %s476 = smul.addr %s473, 2
        %s477 = sadd.s32 %s475, %s476
        %s478 = smul.addr %s477, 8
        %s479 = scalar_lea.vmem %s7, %s478
        %s480 = smul.u32 2, %s44
        %s481 = smul.u32 2, %s44
        %p482 = scmp.lt.s32.totalorder %s43, 1
        %s483 = scalar_select %p482, %s43, 1
        %p484 = scmp.lt.s32.totalorder %s45, 24
        %s485 = scalar_select %p484, %s45, 24
        %p486 = scmp.lt.s32.totalorder %s481, 1
        %s487 = scalar_select %p486, %s481, 1
        %s488 = smul.addr %s485, 2
        %s489 = sadd.s32 %s487, %s488
        %s490 = smul.addr %s483, 50
        %s491 = sadd.s32 %s489, %s490
        %s492 = smul.addr %s491, 4
        %s493 = scalar_lea.vmem %s8, %s492
        %s494 = smul.u32 2, %s44
        %s495 = smul.u32 2, %s44
        %p496 = scmp.lt.s32.totalorder %s43, 1
        %s497 = scalar_select %p496, %s43, 1
        %p498 = scmp.lt.s32.totalorder %s45, 24
        %s499 = scalar_select %p498, %s45, 24
        %p500 = scmp.lt.s32.totalorder %s495, 1
        %s501 = scalar_select %p500, %s495, 1
        %s502 = smul.addr %s499, 2
        %s503 = sadd.s32 %s501, %s502
        %s504 = smul.addr %s497, 50
        %s505 = sadd.s32 %s503, %s504
        %s506 = smul.addr %s505, 4
        %s507 = scalar_lea.vmem %s9, %s506
        %s508 = smul.u32 2, %s44
        %s509 = sadd.s32 %s45, %s44
        %s511 = sld [smem:[#allocation4 + %s43]]
        %p512 = scmp.lt.s32.totalorder %s45, %s511
        // Predicated region
        $region61: #{_loss_impl.5} parent=43 // pred_check
          %p513 = pneg %p512
        $region62: #{_loss_impl.5} parent=43 // pred_check_branch
          %515 = sbr.rel (%p513) target = $region64
        $region63: #{_loss_impl.5} parent=43 // pred_region
          %s516 = sshra.s32 %s45, 7
          %s517 = sand.u32 %s45, 127
          %s518 = sadd.s32 %s516, %s43
          %s519 = smul.u32 %s518, 128
          %s520 = sshra.s32 %s45, 7
          %s521 = sand.u32 %s45, 127
          %s522 = sadd.s32 %s519, %s521
          %s523 = sld [smem:[#allocation3 + %s522]]
          %v524 = vld [vmem:[%s479] sm:$0xff]
          %v525 = vld [vmem:[%s479 + $0x8] sm:$0xff]
          %v526 = vstv %s523
          %vm527 = vcmp.eq.s32.totalorder %v524, %v526
          %vm528 = vcmp.eq.s32.totalorder %v525, %v526
          %v529 = vsel %vm527, 1, 0
          %v530 = vsel %vm528, 1, 0
          %v531 = vcvt.s32.f32 %v529
          %v532 = vcvt.s32.f32 %v530
          %s533 = sld [smem:[#allocation5 + %s522]]
          %s534 = sld [smem:[#allocation8 + %s522]]
          %s535 = sld [smem:[#allocation10 + %s522]]
          %s536 = sld [smem:[#allocation11 + %s522]]
          %v537 = vld [vmem:[%s469] sm:$0xff]
          %v538 = vld [vmem:[%s469 + $0x8] sm:$0xff]
          %s539 = scalar_lea.vmem %s469, 16
          %v540 = vld [vmem:[%s539] sm:$0xff]
          %v541 = vld [vmem:[%s539 + $0x8] sm:$0xff]
          %s542 = scalar_lea.vmem %s469, 32
          %v543 = vld [vmem:[%s542] sm:$0xff]
          %v544 = vld [vmem:[%s542 + $0x8] sm:$0xff]
          %v545 = vstv %s533
          %v546 = vsub.f32 %v537, %v545
          %v547 = vsub.f32 %v538, %v545
          %v548 = vmul.f32 %v546, %v546
          %v549 = vmul.f32 %v547, %v547
          %v550 = vstv %s535
          %v551 = vmul.f32 %v548, %v550
          %v552 = vmul.f32 %v549, %v550
          %v553 = vstv %s534
          %v554 = vsub.f32 %v540, %v553
          %v555 = vsub.f32 %v541, %v553
          %v556 = vmul.f32 %v554, %v554
          %v557 = vmul.f32 %v555, %v555
          %v558 = vstv %s536
          %v559 = vmul.f32 %v556, %v558
          %v560 = vmul.f32 %v557, %v558
          %v561 = vadd.f32 %v551, %v559
          %v562 = vadd.f32 %v552, %v560
          %v563 = vsub.f32 0.0, %v561
          %v564 = vsub.f32 0.0, %v562
          %v565 = vmul.f32 %v563, 1.442695
          %v566 = vpow.pop %v565
          %v567 = vmul.f32 %v564, 1.442695
          %v568 = vpow.pop %v567
          %v569 = vmul.f32 %v566, 2.0
          %v570 = vmul.f32 %v568, 2.0
          %v571 = vsub.f32 %v569, 1.0
          %v572 = vsub.f32 %v570, 1.0
          %v573 = vpack.c.bf16 %v572, %v571
          %v575 = vunpack.c.l.b16 %v573
          %v576 = vunpack.c.h.b16 %v573
          %v577 = vpack.c.b16 %v575, %v575
          %v578 = vpack.c.b16 %v576, %v576
          %581 = vst [vmem:[%s493] sm:$0xf] %v577
          %582 = vst [vmem:[%s493 + $0x4] sm:$0xf] %v578
          %v583 = vpack.c.bf16 %v532, %v531
          %v585 = vunpack.c.l.b16 %v583
          %v586 = vunpack.c.h.b16 %v583
          %v587 = vpack.c.b16 %v585, %v585
          %v588 = vpack.c.b16 %v586, %v586
          %591 = vst [vmem:[%s507] sm:$0xf] %v587
          %592 = vst [vmem:[%s507 + $0x4] sm:$0xf] %v588
          %v593 = vsub.f32 %v543, %v566
          %v594 = vsub.f32 %v544, %v568
          %v595 = vmul.f32 %v593, %v593
          %v596 = vmul.f32 %v594, %v594
          %v597 = vmul.f32 %v531, %v595
          %v598 = vmul.f32 %v532, %v596
          %v599 = vadd.f32 %v597, %v598
          %600 = vadd.xlane.f32.xlu0 %v599
          %v601 = vpop.xlane.xlu0 %600
          %v602 = vrot.slane %v601, 4
          %v603 = vadd.f32 %v601, %v602
          %v604 = vrot.slane %v603, 2
          %v605 = vadd.f32 %v603, %v604
          %v606 = vrot.slane %v605, 1
          %v607 = vadd.f32 %v605, %v606
          %s608 = vtos %v607
          %vm609 = vcmp.gt.f32.partialorder %v566, 0.5
          %vm610 = vcmp.gt.f32.partialorder %v568, 0.5
          %v611 = vsel %vm609, 1, 0
          %v612 = vsel %vm610, 1, 0
          %v613 = vcvt.s32.f32 %v611
          %v614 = vcvt.s32.f32 %v612
          %v615 = vmul.f32 %v613, %v531
          %v616 = vmul.f32 %v614, %v532
          %v617 = vadd.f32 %v615, %v616
          %618 = vadd.xlane.f32.xlu0 %v617
          %v619 = vpop.xlane.xlu0 %618
          %v620 = vrot.slane %v619, 4
          %v621 = vadd.f32 %v619, %v620
          %v622 = vrot.slane %v621, 2
          %v623 = vadd.f32 %v621, %v622
          %v624 = vrot.slane %v623, 1
          %v625 = vadd.f32 %v623, %v624
          %s626 = vtos %v625
          %v627 = vadd.f32 %v613, %v614
          %628 = vadd.xlane.f32.xlu0 %v627
          %v629 = vpop.xlane.xlu0 %628
          %v630 = vrot.slane %v629, 4
          %v631 = vadd.f32 %v629, %v630
          %v632 = vrot.slane %v631, 2
          %v633 = vadd.f32 %v631, %v632
          %v634 = vrot.slane %v633, 1
          %v635 = vadd.f32 %v633, %v634
          %s636 = vtos %v635
          %v637 = vlaneseq
          %v638 = vand.u32 %v637, 127
          %vm639 = vcmp.eq.s32.totalorder %v638, 0
          %v640 = vstv %s608
          %v641 = vsel %vm639, %v640, 0.0
          %vm642 = vcmp.eq.s32.totalorder %v638, 1
          %v643 = vstv %s626
          %v644 = vsel %vm642, %v643, %v641
          %vm645 = vcmp.eq.s32.totalorder %v638, 2
          %v646 = vstv %s636
          %v647 = vsel %vm645, %v646, %v644
          %648 = vst [vmem:[%s460] sm:$0x1] %v647
        $region64: #{_loss_impl.5} parent=43 // pred_fallthru
          _
        %p649 = scmp.ge.s32.totalorder %s45, %s511
        // Predicated region
        $region65: #{_loss_impl.5} parent=43 // pred_check
          %p650 = pneg %p649
        $region66: #{_loss_impl.5} parent=43 // pred_check_branch
          %652 = sbr.rel (%p650) target = $region68
        $region67: #{_loss_impl.5} parent=43 // pred_region
          %653 = vst [vmem:[%s493] sm:$0xf] 0
          %654 = vst [vmem:[%s493 + $0x4] sm:$0xf] 0
          %655 = vst [vmem:[%s507] sm:$0xf] 0
          %656 = vst [vmem:[%s507 + $0x4] sm:$0xf] 0
          %657 = vst [vmem:[%s460] sm:$0x1] 0.0
        $region68: #{_loss_impl.5} parent=43 // pred_fallthru
          _
        %s658 = smul.u32 2, %s44
        %p659 = scmp.lt.s32.totalorder %s43, 1
        %s660 = scalar_select %p659, %s43, 1
        %p661 = scmp.lt.s32.totalorder %s45, 24
        %s662 = scalar_select %p661, %s45, 24
        %p663 = scmp.lt.s32.totalorder %s658, 1
        %s664 = scalar_select %p663, %s658, 1
        %s665 = smul.addr %s662, 2
        %s666 = sadd.s32 %s664, %s665
        %s667 = smul.addr %s660, 50
        %s668 = sadd.s32 %s666, %s667
        %s669 = smul.addr %s668, 4
        %s670 = scalar_lea.vmem %s8, %s669
        %s671 = smul.u32 2, %s44
        %p672 = scmp.lt.s32.totalorder %s43, 1
        %s673 = scalar_select %p672, %s43, 1
        %p674 = scmp.lt.s32.totalorder %s45, 24
        %s675 = scalar_select %p674, %s45, 24
        %p676 = scmp.lt.s32.totalorder %s671, 1
        %s677 = scalar_select %p676, %s671, 1
        %s678 = smul.addr %s675, 2
        %s679 = sadd.s32 %s677, %s678
        %s680 = smul.addr %s673, 50
        %s681 = sadd.s32 %s679, %s680
        %s682 = smul.addr %s681, 4
        %s683 = scalar_lea.vmem %s9, %s682
        %s684 = sand.u32 %s269, 1
        %s685 = scalar_lea.sflag [#allocation6], %s684
        %s686 = sand.u32 %s269, 1
        %s687 = scalar_lea.vmem [#allocation13], %s686
        // Predicated region
        $region69: #{_loss_impl.5} parent=43 // pred_check
          %p688 = pneg %p219
        $region70: #{_loss_impl.5} parent=43 // pred_check_branch
          %690 = sbr.rel (%p688) target = $region72
        $region71: #{_loss_impl.5} parent=43 // pred_region
          %s691 = smul.u32 2, %s44
        $region72: #{_loss_impl.5} parent=43 // pred_fallthru
          _
        // Predicated region
        $region73: #{_loss_impl.5} parent=43 // pred_check
          %p692 = pneg %p249
        $region74: #{_loss_impl.5} parent=43 // pred_check_branch
          %694 = sbr.rel (%p692) target = $region76
        $region75: #{_loss_impl.5} parent=43 // pred_region
          %s695 = smul.u32 2, %s44
        $region76: #{_loss_impl.5} parent=43 // pred_fallthru
          _
        // Predicated region
        $region77: #{_loss_impl.5} parent=43 // pred_check
          %p696 = pneg %p279
        $region78: #{_loss_impl.5} parent=43 // pred_check_branch
          %698 = sbr.rel (%p696) target = $region80
        $region79: #{_loss_impl.5} parent=43 // pred_region
          %s699 = sadd.s32 %s45, %s44
          %s701 = ssub.s32 16, 16
          %702 = vsyncadd %s685, %s701
          %s703 = smul.addr %s43, 25
          %s704 = sadd.s32 %s699, %s703
          %s705 = smul.addr %s704, 16
          %s706 = scalar_lea.hbm %s10, %s705
          %s708 = sshll.u32 %s687, 4
          %s709 = int_to_ptr.vmem [resolvable:$true] %s708
          %711 = dma.vmem_to_hbm [thread:$0]  %s709, 16, %s706, %s685
        $region80: #{_loss_impl.5} parent=43 // pred_fallthru
          _
      $region44: #{_loss_impl.5} parent=5 // pred_fallthru
        _
      %p712 = scmp.le.s32.totalorder 2, %s33
      // Predicated region
      $region81: #{_loss_impl.5} parent=5 // pred_check
        %p713 = pneg %p712
      $region82: #{_loss_impl.5} parent=5 // pred_check_branch
        %715 = sbr.rel (%p713) target = $region84
      $region83: #{_loss_impl.5} parent=5 // pred_region
        %s716 = ssub.s32 %s33, 2
        // Predicated region
        $region85: #{_loss_impl.5} parent=83 // pred_check
          %p717 = pneg %p225
        $region86: #{_loss_impl.5} parent=83 // pred_check_branch
          %719 = sbr.rel (%p717) target = $region88
        $region87: #{_loss_impl.5} parent=83 // pred_region
          %s720 = smul.u32 2, %s47
          %p721 = scmp.lt.s32.totalorder %s46, 1
          %s722 = scalar_select %p721, %s46, 1
          %p723 = scmp.lt.s32.totalorder %s48, 24
          %s724 = scalar_select %p723, %s48, 24
          %p725 = scmp.lt.s32.totalorder %s720, 1
          %s726 = scalar_select %p725, %s720, 1
          %s727 = smul.addr %s724, 2
          %s728 = sadd.s32 %s726, %s727
          %s729 = smul.addr %s722, 50
          %s730 = sadd.s32 %s728, %s729
          %s731 = smul.addr %s730, 4
          %s732 = scalar_lea.vmem %s8, %s731
        $region88: #{_loss_impl.5} parent=83 // pred_fallthru
          _
        // Predicated region
        $region89: #{_loss_impl.5} parent=83 // pred_check
          %p733 = pneg %p255
        $region90: #{_loss_impl.5} parent=83 // pred_check_branch
          %735 = sbr.rel (%p733) target = $region92
        $region91: #{_loss_impl.5} parent=83 // pred_region
          %s736 = smul.u32 2, %s47
          %p737 = scmp.lt.s32.totalorder %s46, 1
          %s738 = scalar_select %p737, %s46, 1
          %p739 = scmp.lt.s32.totalorder %s48, 24
          %s740 = scalar_select %p739, %s48, 24
          %p741 = scmp.lt.s32.totalorder %s736, 1
          %s742 = scalar_select %p741, %s736, 1
          %s743 = smul.addr %s740, 2
          %s744 = sadd.s32 %s742, %s743
          %s745 = smul.addr %s738, 50
          %s746 = sadd.s32 %s744, %s745
          %s747 = smul.addr %s746, 4
          %s748 = scalar_lea.vmem %s9, %s747
        $region92: #{_loss_impl.5} parent=83 // pred_fallthru
          _
        // Predicated region
        $region93: #{_loss_impl.5} parent=83 // pred_check
          %p749 = pneg %p285
        $region94: #{_loss_impl.5} parent=83 // pred_check_branch
          %751 = sbr.rel (%p749) target = $region96
        $region95: #{_loss_impl.5} parent=83 // pred_region
          %s752 = sand.u32 %s270, 1
          %s753 = scalar_lea.sflag [#allocation6], %s752
          %s754 = sand.u32 %s270, 1
          %s755 = scalar_lea.vmem [#allocation13], %s754
          %756 = dma.done %s753, 16
        $region96: #{_loss_impl.5} parent=83 // pred_fallthru
          _
      $region84: #{_loss_impl.5} parent=5 // pred_fallthru
        _
    $region6: #{_loss_impl.5} parent=1 // loop_footer
      %s37 = sadd.s32 1, %s33
    $region7: #{_loss_impl.5} parent=1 // loop_footer_branch
      %32 = sbr.rel target = $region3
    $region8: #{_loss_impl.5} parent=1 // loop_exit
      _
    %757 = vsyncpa [#allocation6], 1
    %s758 = scalar_lea.sflag [#allocation6], 1
    %759 = vsyncpa %s758, 1
    %760 = vsyncpa [#allocation7], 1
    %s761 = scalar_lea.sflag [#allocation7], 1
    %762 = vsyncpa %s761, 1
    %763 = vsyncpa [#allocation9], 1
    %764 = vsyncpa [#allocation12], 1

</llo_original>
